<compile_context>
chip_gen: v7x
topology: tpu7x:2x2x1
jax: 0.10.0
libtpu: 0.0.40
codegen_flags: <defaults>
</compile_context>

<pallas_src>
import functools

import numpy as np
import jax
import jax.numpy as jnp
from jax.experimental import pallas as pl
from jax.experimental.pallas import tpu as pltpu


def _bilinear_matrix(out_size: int, in_size: int) -> np.ndarray:
    """Dense (out_size, in_size) 1-D bilinear interpolation matrix, align_corners=True."""
    A = np.zeros((out_size, in_size), dtype=np.float32)
    if out_size == 1 or in_size == 1:
        A[:, 0] = 1.0
        return A
    scale = (in_size - 1) / (out_size - 1)
    for o in range(out_size):
        src = o * scale
        lo = int(np.floor(src))
        hi = min(lo + 1, in_size - 1)
        frac = src - lo
        A[o, lo] += 1.0 - frac
        A[o, hi] += frac
    return A


def _upsample_pad_matrix(H1, W1, H, W, pad_t, pad_l) -> np.ndarray:
    """(H*W, H1*W1) operator: flattened bilinear x2 upsample + zero F.pad placement."""
    Hu, Wu = 2 * H1, 2 * W1
    A_h = _bilinear_matrix(Hu, H1)              # (Hu, H1)
    A_w = _bilinear_matrix(Wu, W1)              # (Wu, W1)
    K = np.kron(A_h, A_w)                       # (Hu*Wu, H1*W1), row index oh*Wu+ow
    A = np.zeros((H * W, H1 * W1), np.float32)
    for oh in range(Hu):
        r0 = (oh + pad_t) * W + pad_l
        A[r0:r0 + Wu, :] = K[oh * Wu:(oh + 1) * Wu, :]
    return A


def _up_kernel(x1_ref, x2_ref, aup_ref, w1_ref, s1_ref, b1_ref,
               w2_ref, s2_ref, b2_ref, out_ref,
               xe1_scr, xe2_scr, col1_scr, col2_scr,
               *, C2, Cin, Cm, H, W):
    HW = H * W
    P = W + 1    # flat halo width: one row + one column on each side

    # In the flattened H*W lane layout, a +-1 column shift wraps across rows;
    # these lane masks zero the wrapped positions.
    lane = jax.lax.broadcasted_iota(jnp.int32, (1, HW), 1)
    col = lane % W
    not_first = col != 0            # used for dx == 0 (left neighbour)
    not_last = col != (W - 1)       # used for dx == 2 (right neighbour)

    def build_cols(xe_scr, col_scr, c):
        # xe_scr holds [zeros(P) | x_flat(HW) | zeros(P)]; tap (dy,dx) of the
        # padded 3x3 window is a 256-lane slice starting at dy*W + dx.
        for dy in range(3):
            for dx in range(3):
                t = dy * 3 + dx
                tap = xe_scr[:, dy * W + dx: dy * W + dx + HW]
                if dx == 0:
                    tap = jnp.where(not_first, tap, 0.0)
                elif dx == 2:
                    tap = jnp.where(not_last, tap, 0.0)
                col_scr[t * c:(t + 1) * c, :] = tap

    # ---- bilinear x2 upsample + F.pad: one lane-dense MXU matmul over all channels
    up = jnp.dot(x1_ref[0], aup_ref[...], preferred_element_type=jnp.float32)   # (C1, HW)

    # ---- concat([x2, up], dim=channels) staged straight into the haloed buffer
    xe1_scr[:, :P] = jnp.zeros((Cin, P), jnp.float32)          # halos re-zeroed each
    xe1_scr[:, P + HW:] = jnp.zeros((Cin, P), jnp.float32)     # step (megacore-safe)
    xe1_scr[:C2, P:P + HW] = x2_ref[0]
    xe1_scr[C2:, P:P + HW] = up

    # ---- conv1: 3x3 pad=1 as im2col + single MXU matmul, folded BN, LeakyReLU(0.1)
    build_cols(xe1_scr, col1_scr, Cin)
    y1 = jnp.dot(w1_ref[...], col1_scr[...], preferred_element_type=jnp.float32)  # (Cm, HW)
    y1 = y1 * s1_ref[...] + b1_ref[...]
    y1 = jnp.where(y1 > 0, y1, 0.1 * y1)

    # ---- conv2: same scheme on the mid activations
    xe2_scr[:, :P] = jnp.zeros((Cm, P), jnp.float32)
    xe2_scr[:, P + HW:] = jnp.zeros((Cm, P), jnp.float32)
    xe2_scr[:, P:P + HW] = y1
    build_cols(xe2_scr, col2_scr, Cm)
    y2 = jnp.dot(w2_ref[...], col2_scr[...], preferred_element_type=jnp.float32)  # (Co, HW)
    y2 = y2 * s2_ref[...] + b2_ref[...]
    out_ref[0] = jnp.where(y2 > 0, y2, 0.1 * y2)


def up_forward(x1, x2, params):
    """Pallas implementation of Up.forward(x1, x2) (bilinear=True)."""
    N, C1, H1, W1 = x1.shape
    N2, C2, H, W = x2.shape
    assert N == N2
    Cm, Cin = params["w1"].shape[:2]
    Co = params["w2"].shape[0]
    assert Cin == C1 + C2

    Hu, Wu = 2 * H1, 2 * W1
    diffY, diffX = H - Hu, W - Wu
    assert diffY >= 0 and diffX >= 0   # TODO(synk): crop branch not handled
    pad_t, pad_l = diffY // 2, diffX // 2
    HW = H * W
    HWP = HW + 2 * (W + 1)

    # Host precompute: fused upsample+pad operator and im2col-ordered conv weights.
    A_upT = jnp.asarray(_upsample_pad_matrix(H1, W1, H, W, pad_t, pad_l).T)      # (H1*W1, HW)
    w1_mat = jnp.asarray(params["w1"]).transpose(0, 2, 3, 1).reshape(Cm, 9 * Cin).astype(jnp.float32)
    w2_mat = jnp.asarray(params["w2"]).transpose(0, 2, 3, 1).reshape(Co, 9 * Cm).astype(jnp.float32)
    s1 = params["scale1"].reshape(Cm, 1).astype(jnp.float32)
    b1 = params["bias1"].reshape(Cm, 1).astype(jnp.float32)
    s2 = params["scale2"].reshape(Co, 1).astype(jnp.float32)
    b2 = params["bias2"].reshape(Co, 1).astype(jnp.float32)

    # Lane-dense flattened activations (free reshapes outside the kernel).
    x1_f = x1.reshape(N, C1, H1 * W1).astype(jnp.float32)
    x2_f = x2.reshape(N, C2, HW).astype(jnp.float32)

    kernel = functools.partial(_up_kernel, C2=C2, Cin=Cin, Cm=Cm, H=H, W=W)

    out_f = pl.pallas_call(
        kernel,
        out_shape=jax.ShapeDtypeStruct((N, Co, HW), jnp.float32),
        grid=(N,),
        in_specs=[
            pl.BlockSpec((1, C1, H1 * W1), lambda n: (n, 0, 0)),   # x1 (flattened)
            pl.BlockSpec((1, C2, HW), lambda n: (n, 0, 0)),        # x2 (flattened)
            pl.BlockSpec((H1 * W1, HW), lambda n: (0, 0)),         # upsample+pad op^T
            pl.BlockSpec((Cm, 9 * Cin), lambda n: (0, 0)),         # conv1 weights (im2col)
            pl.BlockSpec((Cm, 1), lambda n: (0, 0)),               # scale1
            pl.BlockSpec((Cm, 1), lambda n: (0, 0)),               # bias1
            pl.BlockSpec((Co, 9 * Cm), lambda n: (0, 0)),          # conv2 weights (im2col)
            pl.BlockSpec((Co, 1), lambda n: (0, 0)),               # scale2
            pl.BlockSpec((Co, 1), lambda n: (0, 0)),               # bias2
        ],
        out_specs=pl.BlockSpec((1, Co, HW), lambda n: (n, 0, 0)),
        scratch_shapes=[
            pltpu.VMEM((Cin, HWP), jnp.float32),      # haloed flat input, conv1
            pltpu.VMEM((Cm, HWP), jnp.float32),       # haloed flat input, conv2
            pltpu.VMEM((9 * Cin, HW), jnp.float32),   # im2col, conv1
            pltpu.VMEM((9 * Cm, HW), jnp.float32),    # im2col, conv2
        ],
        compiler_params=pltpu.CompilerParams(
            dimension_semantics=("parallel",)),
    )(x1_f, x2_f, A_upT, w1_mat, s1, b1, w2_mat, s2, b2)

    return out_f.reshape(N, Co, H, W)


def init_params(key, c_in, c_out, c_mid, eps=1e-5):
    """Deterministic synthetic params; BN (running stats + affine) + conv bias folded."""
    ks = jax.random.split(key, 12)
    w1 = jax.random.normal(ks[0], (c_mid, c_in, 3, 3), jnp.float32) * 0.2
    b1 = jax.random.normal(ks[1], (c_mid,), jnp.float32) * 0.1
    gamma1 = 1.0 + 0.1 * jax.random.normal(ks[2], (c_mid,), jnp.float32)
    beta1 = 0.1 * jax.random.normal(ks[3], (c_mid,), jnp.float32)
    mean1 = 0.1 * jax.random.normal(ks[4], (c_mid,), jnp.float32)
    var1 = 0.5 + 0.5 * jnp.abs(jax.random.normal(ks[5], (c_mid,), jnp.float32))

    w2 = jax.random.normal(ks[6], (c_out, c_mid, 3, 3), jnp.float32) * 0.2
    b2 = jax.random.normal(ks[7], (c_out,), jnp.float32) * 0.1
    gamma2 = 1.0 + 0.1 * jax.random.normal(ks[8], (c_out,), jnp.float32)
    beta2 = 0.1 * jax.random.normal(ks[9], (c_out,), jnp.float32)
    mean2 = 0.1 * jax.random.normal(ks[10], (c_out,), jnp.float32)
    var2 = 0.5 + 0.5 * jnp.abs(jax.random.normal(ks[11], (c_out,), jnp.float32))

    s1 = gamma1 / jnp.sqrt(var1 + eps)
    bias1 = (b1 - mean1) * s1 + beta1
    s2 = gamma2 / jnp.sqrt(var2 + eps)
    bias2 = (b2 - mean2) * s2 + beta2
    return dict(w1=w1, scale1=s1, bias1=bias1, w2=w2, scale2=s2, bias2=bias2)


def up_reference(x1, x2, params):
    """Pure-JAX reference with identical math (for correctness check)."""
    N, C1, H1, W1 = x1.shape
    _, C2, H, W = x2.shape
    Hu, Wu = 2 * H1, 2 * W1
    A_h = jnp.asarray(_bilinear_matrix(Hu, H1))
    A_w = jnp.asarray(_bilinear_matrix(Wu, W1))
    hp = jax.lax.Precision.HIGHEST
    up = jnp.einsum("oh,nchw,pw->ncop", A_h, x1, A_w, precision=hp)
    diffY, diffX = H - Hu, W - Wu
    up = jnp.pad(up, ((0, 0), (0, 0),
                      (diffY // 2, diffY - diffY // 2),
                      (diffX // 2, diffX - diffX // 2)))
    x = jnp.concatenate([x2, up], axis=1)

    def conv_bn_lrelu(x, w, s, b):
        y = jax.lax.conv_general_dilated(
            x, w, window_strides=(1, 1), padding=((1, 1), (1, 1)),
            dimension_numbers=("NCHW", "OIHW", "NCHW"), precision=hp)
        y = y * s[None, :, None, None] + b[None, :, None, None]
        return jnp.where(y > 0, y, 0.1 * y)

    y = conv_bn_lrelu(x, params["w1"], params["scale1"], params["bias1"])
    y = conv_bn_lrelu(y, params["w2"], params["scale2"], params["bias2"])
    return y


if __name__ == "__main__":
    key = jax.random.PRNGKey(0)
    k1, k2, k3 = jax.random.split(key, 3)

    # Small shapes: x1 is the coarse feature map, x2 the skip connection.
    N, C1, H1, W1 = 2, 4, 8, 8
    C2, H, W = 4, 16, 16
    in_channels = C1 + C2            # channels after concat -> DoubleConv in_channels
    out_channels = 4
    mid_channels = in_channels // 2  # bilinear=True => mid = in_channels // 2

    x1 = jax.random.normal(k1, (N, C1, H1, W1), jnp.float32)
    x2 = jax.random.normal(k2, (N, C2, H, W), jnp.float32)
    params = init_params(k3, in_channels, out_channels, mid_channels)

    out = up_forward(x1, x2, params)
    out = jax.block_until_ready(out)
    assert out.shape == (N, out_channels, H, W)

    ref = jax.block_until_ready(up_reference(x1, x2, params))
    np.testing.assert_allclose(np.asarray(out), np.asarray(ref), rtol=5e-3, atol=5e-3)

    print("KERNEL_OK")
</pallas_src>

<mosaic_0001>
module attributes {stable_mosaic.version = 11 : i64} {
  func.func @_up_kernel(%arg0: i32, %arg1: memref<1x4x64xf32, #tpu.memory_space<vmem>>, %arg2: memref<1x4x256xf32, #tpu.memory_space<vmem>>, %arg3: memref<64x256xf32, #tpu.memory_space<vmem>>, %arg4: memref<4x72xf32, #tpu.memory_space<vmem>>, %arg5: memref<4x1xf32, #tpu.memory_space<vmem>>, %arg6: memref<4x1xf32, #tpu.memory_space<vmem>>, %arg7: memref<4x36xf32, #tpu.memory_space<vmem>>, %arg8: memref<4x1xf32, #tpu.memory_space<vmem>>, %arg9: memref<4x1xf32, #tpu.memory_space<vmem>>, %arg10: memref<1x4x256xf32, #tpu.memory_space<vmem>>, %arg11: memref<8x290xf32, #tpu.memory_space<vmem>>, %arg12: memref<4x290xf32, #tpu.memory_space<vmem>>, %arg13: memref<72x256xf32, #tpu.memory_space<vmem>>, %arg14: memref<36x256xf32, #tpu.memory_space<vmem>>) attributes {dimension_semantics = [#tpu.dimension_semantics<parallel>], iteration_bounds = array<i64: 2>, scalar_prefetch = 0 : i64, scratch_operands = 4 : i64, tpu.core_type = #tpu.core_type<tc>, window_params = [{transform_indices = @transform_0, window_bounds = array<i64: 1, 4, 64>}, {transform_indices = @transform_1, window_bounds = array<i64: 1, 4, 256>}, {pipeline_mode = #tpu.pipeline_mode<synchronous>, transform_indices = @transform_2, window_bounds = array<i64: 64, 256>}, {pipeline_mode = #tpu.pipeline_mode<synchronous>, transform_indices = @transform_3, window_bounds = array<i64: 4, 72>}, {pipeline_mode = #tpu.pipeline_mode<synchronous>, transform_indices = @transform_4, window_bounds = array<i64: 4, 1>}, {pipeline_mode = #tpu.pipeline_mode<synchronous>, transform_indices = @transform_5, window_bounds = array<i64: 4, 1>}, {pipeline_mode = #tpu.pipeline_mode<synchronous>, transform_indices = @transform_6, window_bounds = array<i64: 4, 36>}, {pipeline_mode = #tpu.pipeline_mode<synchronous>, transform_indices = @transform_7, window_bounds = array<i64: 4, 1>}, {pipeline_mode = #tpu.pipeline_mode<synchronous>, transform_indices = @transform_8, window_bounds = array<i64: 4, 1>}, {transform_indices = @transform_9, window_bounds = array<i64: 1, 4, 256>}]} {
    %0 = tpu.iota {dimensions = array<i32: 1>} : vector<1x256xi32>
    %c16_i32 = arith.constant 16 : i32
    %c0_i32 = arith.constant 0 : i32
    %1 = arith.cmpi eq, %c16_i32, %c0_i32 : i32
    %c1_i32 = arith.constant 1 : i32
    %2 = arith.select %1, %c1_i32, %c16_i32 : i32
    %3 = vector.broadcast %2 : i32 to vector<1x256xi32>
    %4 = arith.remsi %0, %3 : vector<1x256xi32>
    %c0_i32_0 = arith.constant 0 : i32
    %5 = vector.broadcast %c0_i32_0 : i32 to vector<1x256xi32>
    %6 = arith.cmpi ne, %4, %5 : vector<1x256xi32>
    %c0_i32_1 = arith.constant 0 : i32
    %7 = vector.broadcast %c0_i32_1 : i32 to vector<1x256xi32>
    %8 = arith.cmpi slt, %4, %7 : vector<1x256xi32>
    %c0_i32_2 = arith.constant 0 : i32
    %9 = arith.cmpi slt, %2, %c0_i32_2 : i32
    %10 = vector.broadcast %9 : i1 to vector<1x256xi1>
    %11 = vector.broadcast %10 : vector<1x256xi1> to vector<1x256xi1>
    %12 = arith.xori %8, %11 : vector<1x256xi1>
    %13 = arith.andi %12, %6 : vector<1x256xi1>
    %14 = vector.broadcast %2 : i32 to vector<1x256xi32>
    %15 = arith.addi %4, %14 : vector<1x256xi32>
    %16 = arith.select %13, %15, %4 : vector<1x256xi1>, vector<1x256xi32>
    %c0_i32_3 = arith.constant 0 : i32
    %17 = vector.broadcast %c0_i32_3 : i32 to vector<1x256xi32>
    %18 = arith.cmpi ne, %16, %17 : vector<1x256xi32>
    %c15_i32 = arith.constant 15 : i32
    %19 = vector.broadcast %c15_i32 : i32 to vector<1x256xi32>
    %20 = arith.cmpi ne, %16, %19 : vector<1x256xi32>
    %c0 = arith.constant 0 : index
    %c0_4 = arith.constant 0 : index
    %c0_5 = arith.constant 0 : index
    %21 = vector.load %arg1[%c0, %c0_4, %c0_5] : memref<1x4x64xf32, #tpu.memory_space<vmem>>, vector<1x4x64xf32>
    %22 = vector.shape_cast %21 : vector<1x4x64xf32> to vector<4x64xf32>
    %c0_6 = arith.constant 0 : index
    %c0_7 = arith.constant 0 : index
    %23 = vector.load %arg3[%c0_6, %c0_7] : memref<64x256xf32, #tpu.memory_space<vmem>>, vector<64x256xf32>
    %cst = arith.constant dense<0.000000e+00> : vector<4x256xf32>
    %24 = tpu.matmul %22, %23, %cst {dimension_numbers = #tpu.dot_dimension_numbers<[1], [0], [0], [1], [0, 0, 1, 1], [], []>} : vector<4x64xf32>, vector<64x256xf32>, vector<4x256xf32> -> vector<4x256xf32>
    %cst_8 = arith.constant 0.000000e+00 : f32
    %25 = vector.broadcast %cst_8 : f32 to vector<8x17xf32>
    %c0_9 = arith.constant 0 : index
    %c0_10 = arith.constant 0 : index
    %26 = vector.load %arg11[%c0_9, %c0_10] : memref<8x290xf32, #tpu.memory_space<vmem>>, vector<8x17xf32>
    tpu.vector_store %arg11[%c0_9, %c0_10], %25 {strides = array<i32>} : memref<8x290xf32, #tpu.memory_space<vmem>>, vector<8x17xf32>,
    %cst_11 = arith.constant 0.000000e+00 : f32
    %27 = vector.broadcast %cst_11 : f32 to vector<8x17xf32>
    %c0_12 = arith.constant 0 : index
    %c273 = arith.constant 273 : index
    %28 = vector.load %arg11[%c0_12, %c273] : memref<8x290xf32, #tpu.memory_space<vmem>>, vector<8x17xf32>
    tpu.vector_store %arg11[%c0_12, %c273], %27 {strides = array<i32>} : memref<8x290xf32, #tpu.memory_space<vmem>>, vector<8x17xf32>,
    %c0_13 = arith.constant 0 : index
    %c0_14 = arith.constant 0 : index
    %c0_15 = arith.constant 0 : index
    %29 = vector.load %arg2[%c0_13, %c0_14, %c0_15] : memref<1x4x256xf32, #tpu.memory_space<vmem>>, vector<1x4x256xf32>
    %30 = vector.shape_cast %29 : vector<1x4x256xf32> to vector<4x256xf32>
    %c0_16 = arith.constant 0 : index
    %c17 = arith.constant 17 : index
    %31 = vector.load %arg11[%c0_16, %c17] : memref<8x290xf32, #tpu.memory_space<vmem>>, vector<4x256xf32>
    tpu.vector_store %arg11[%c0_16, %c17], %30 {strides = array<i32>} : memref<8x290xf32, #tpu.memory_space<vmem>>, vector<4x256xf32>,
    %c4 = arith.constant 4 : index
    %c17_17 = arith.constant 17 : index
    %32 = vector.load %arg11[%c4, %c17_17] : memref<8x290xf32, #tpu.memory_space<vmem>>, vector<4x256xf32>
    tpu.vector_store %arg11[%c4, %c17_17], %24 {strides = array<i32>} : memref<8x290xf32, #tpu.memory_space<vmem>>, vector<4x256xf32>,
    %c0_18 = arith.constant 0 : index
    %c0_19 = arith.constant 0 : index
    %33 = vector.load %arg11[%c0_18, %c0_19] : memref<8x290xf32, #tpu.memory_space<vmem>>, vector<8x256xf32>
    %cst_20 = arith.constant 0.000000e+00 : f32
    %34 = vector.shape_cast %18 : vector<1x256xi1> to vector<1x256xi1>
    %35 = vector.broadcast %34 : vector<1x256xi1> to vector<8x256xi1>
    %36 = vector.broadcast %cst_20 : f32 to vector<8x256xf32>
    %37 = arith.select %35, %33, %36 : vector<8x256xi1>, vector<8x256xf32>
    %c0_21 = arith.constant 0 : index
    %c0_22 = arith.constant 0 : index
    %38 = vector.load %arg13[%c0_21, %c0_22] : memref<72x256xf32, #tpu.memory_space<vmem>>, vector<8x256xf32>
    tpu.vector_store %arg13[%c0_21, %c0_22], %37 {strides = array<i32>} : memref<72x256xf32, #tpu.memory_space<vmem>>, vector<8x256xf32>,
    %c0_23 = arith.constant 0 : index
    %c1 = arith.constant 1 : index
    %39 = vector.load %arg11[%c0_23, %c1] : memref<8x290xf32, #tpu.memory_space<vmem>>, vector<8x256xf32>
    %c8 = arith.constant 8 : index
    %c0_24 = arith.constant 0 : index
    %40 = vector.load %arg13[%c8, %c0_24] : memref<72x256xf32, #tpu.memory_space<vmem>>, vector<8x256xf32>
    tpu.vector_store %arg13[%c8, %c0_24], %39 {strides = array<i32>} : memref<72x256xf32, #tpu.memory_space<vmem>>, vector<8x256xf32>,
    %c0_25 = arith.constant 0 : index
    %c2 = arith.constant 2 : index
    %41 = vector.load %arg11[%c0_25, %c2] : memref<8x290xf32, #tpu.memory_space<vmem>>, vector<8x256xf32>
    %cst_26 = arith.constant 0.000000e+00 : f32
    %42 = vector.shape_cast %20 : vector<1x256xi1> to vector<1x256xi1>
    %43 = vector.broadcast %42 : vector<1x256xi1> to vector<8x256xi1>
    %44 = vector.broadcast %cst_26 : f32 to vector<8x256xf32>
    %45 = arith.select %43, %41, %44 : vector<8x256xi1>, vector<8x256xf32>
    %c16 = arith.constant 16 : index
    %c0_27 = arith.constant 0 : index
    %46 = vector.load %arg13[%c16, %c0_27] : memref<72x256xf32, #tpu.memory_space<vmem>>, vector<8x256xf32>
    tpu.vector_store %arg13[%c16, %c0_27], %45 {strides = array<i32>} : memref<72x256xf32, #tpu.memory_space<vmem>>, vector<8x256xf32>,
    %c0_28 = arith.constant 0 : index
    %c16_29 = arith.constant 16 : index
    %47 = vector.load %arg11[%c0_28, %c16_29] : memref<8x290xf32, #tpu.memory_space<vmem>>, vector<8x256xf32>
    %cst_30 = arith.constant 0.000000e+00 : f32
    %48 = vector.shape_cast %18 : vector<1x256xi1> to vector<1x256xi1>
    %49 = vector.broadcast %48 : vector<1x256xi1> to vector<8x256xi1>
    %50 = vector.broadcast %cst_30 : f32 to vector<8x256xf32>
    %51 = arith.select %49, %47, %50 : vector<8x256xi1>, vector<8x256xf32>
    %c24 = arith.constant 24 : index
    %c0_31 = arith.constant 0 : index
    %52 = vector.load %arg13[%c24, %c0_31] : memref<72x256xf32, #tpu.memory_space<vmem>>, vector<8x256xf32>
    tpu.vector_store %arg13[%c24, %c0_31], %51 {strides = array<i32>} : memref<72x256xf32, #tpu.memory_space<vmem>>, vector<8x256xf32>,
    %c0_32 = arith.constant 0 : index
    %c17_33 = arith.constant 17 : index
    %53 = vector.load %arg11[%c0_32, %c17_33] : memref<8x290xf32, #tpu.memory_space<vmem>>, vector<8x256xf32>
    %c32 = arith.constant 32 : index
    %c0_34 = arith.constant 0 : index
    %54 = vector.load %arg13[%c32, %c0_34] : memref<72x256xf32, #tpu.memory_space<vmem>>, vector<8x256xf32>
    tpu.vector_store %arg13[%c32, %c0_34], %53 {strides = array<i32>} : memref<72x256xf32, #tpu.memory_space<vmem>>, vector<8x256xf32>,
    %c0_35 = arith.constant 0 : index
    %c18 = arith.constant 18 : index
    %55 = vector.load %arg11[%c0_35, %c18] : memref<8x290xf32, #tpu.memory_space<vmem>>, vector<8x256xf32>
    %cst_36 = arith.constant 0.000000e+00 : f32
    %56 = vector.shape_cast %20 : vector<1x256xi1> to vector<1x256xi1>
    %57 = vector.broadcast %56 : vector<1x256xi1> to vector<8x256xi1>
    %58 = vector.broadcast %cst_36 : f32 to vector<8x256xf32>
    %59 = arith.select %57, %55, %58 : vector<8x256xi1>, vector<8x256xf32>
    %c40 = arith.constant 40 : index
    %c0_37 = arith.constant 0 : index
    %60 = vector.load %arg13[%c40, %c0_37] : memref<72x256xf32, #tpu.memory_space<vmem>>, vector<8x256xf32>
    tpu.vector_store %arg13[%c40, %c0_37], %59 {strides = array<i32>} : memref<72x256xf32, #tpu.memory_space<vmem>>, vector<8x256xf32>,
    %c0_38 = arith.constant 0 : index
    %c32_39 = arith.constant 32 : index
    %61 = vector.load %arg11[%c0_38, %c32_39] : memref<8x290xf32, #tpu.memory_space<vmem>>, vector<8x256xf32>
    %cst_40 = arith.constant 0.000000e+00 : f32
    %62 = vector.shape_cast %18 : vector<1x256xi1> to vector<1x256xi1>
    %63 = vector.broadcast %62 : vector<1x256xi1> to vector<8x256xi1>
    %64 = vector.broadcast %cst_40 : f32 to vector<8x256xf32>
    %65 = arith.select %63, %61, %64 : vector<8x256xi1>, vector<8x256xf32>
    %c48 = arith.constant 48 : index
    %c0_41 = arith.constant 0 : index
    %66 = vector.load %arg13[%c48, %c0_41] : memref<72x256xf32, #tpu.memory_space<vmem>>, vector<8x256xf32>
    tpu.vector_store %arg13[%c48, %c0_41], %65 {strides = array<i32>} : memref<72x256xf32, #tpu.memory_space<vmem>>, vector<8x256xf32>,
    %c0_42 = arith.constant 0 : index
    %c33 = arith.constant 33 : index
    %67 = vector.load %arg11[%c0_42, %c33] : memref<8x290xf32, #tpu.memory_space<vmem>>, vector<8x256xf32>
    %c56 = arith.constant 56 : index
    %c0_43 = arith.constant 0 : index
    %68 = vector.load %arg13[%c56, %c0_43] : memref<72x256xf32, #tpu.memory_space<vmem>>, vector<8x256xf32>
    tpu.vector_store %arg13[%c56, %c0_43], %67 {strides = array<i32>} : memref<72x256xf32, #tpu.memory_space<vmem>>, vector<8x256xf32>,
    %c0_44 = arith.constant 0 : index
    %c34 = arith.constant 34 : index
    %69 = vector.load %arg11[%c0_44, %c34] : memref<8x290xf32, #tpu.memory_space<vmem>>, vector<8x256xf32>
    %cst_45 = arith.constant 0.000000e+00 : f32
    %70 = vector.shape_cast %20 : vector<1x256xi1> to vector<1x256xi1>
    %71 = vector.broadcast %70 : vector<1x256xi1> to vector<8x256xi1>
    %72 = vector.broadcast %cst_45 : f32 to vector<8x256xf32>
    %73 = arith.select %71, %69, %72 : vector<8x256xi1>, vector<8x256xf32>
    %c64 = arith.constant 64 : index
    %c0_46 = arith.constant 0 : index
    %74 = vector.load %arg13[%c64, %c0_46] : memref<72x256xf32, #tpu.memory_space<vmem>>, vector<8x256xf32>
    tpu.vector_store %arg13[%c64, %c0_46], %73 {strides = array<i32>} : memref<72x256xf32, #tpu.memory_space<vmem>>, vector<8x256xf32>,
    %c0_47 = arith.constant 0 : index
    %c0_48 = arith.constant 0 : index
    %75 = vector.load %arg4[%c0_47, %c0_48] : memref<4x72xf32, #tpu.memory_space<vmem>>, vector<4x72xf32>
    %c0_49 = arith.constant 0 : index
    %c0_50 = arith.constant 0 : index
    %76 = vector.load %arg13[%c0_49, %c0_50] : memref<72x256xf32, #tpu.memory_space<vmem>>, vector<72x256xf32>
    %cst_51 = arith.constant dense<0.000000e+00> : vector<4x256xf32>
    %77 = tpu.matmul %75, %76, %cst_51 {dimension_numbers = #tpu.dot_dimension_numbers<[1], [0], [0], [1], [0, 0, 1, 1], [], []>} : vector<4x72xf32>, vector<72x256xf32>, vector<4x256xf32> -> vector<4x256xf32>
    %c0_52 = arith.constant 0 : index
    %c0_53 = arith.constant 0 : index
    %78 = vector.load %arg5[%c0_52, %c0_53] : memref<4x1xf32, #tpu.memory_space<vmem>>, vector<4x1xf32>
    %79 = vector.broadcast %78 : vector<4x1xf32> to vector<4x256xf32>
    %80 = arith.mulf %77, %79 : vector<4x256xf32>
    %c0_54 = arith.constant 0 : index
    %c0_55 = arith.constant 0 : index
    %81 = vector.load %arg6[%c0_54, %c0_55] : memref<4x1xf32, #tpu.memory_space<vmem>>, vector<4x1xf32>
    %82 = vector.broadcast %81 : vector<4x1xf32> to vector<4x256xf32>
    %83 = arith.addf %80, %82 : vector<4x256xf32>
    %cst_56 = arith.constant 0.000000e+00 : f32
    %84 = vector.broadcast %cst_56 : f32 to vector<4x256xf32>
    %85 = arith.cmpf ogt, %83, %84 : vector<4x256xf32>
    %cst_57 = arith.constant 1.000000e-01 : f32
    %86 = vector.broadcast %cst_57 : f32 to vector<4x256xf32>
    %87 = arith.mulf %86, %83 : vector<4x256xf32>
    %88 = arith.select %85, %83, %87 : vector<4x256xi1>, vector<4x256xf32>
    %cst_58 = arith.constant 0.000000e+00 : f32
    %89 = vector.broadcast %cst_58 : f32 to vector<4x17xf32>
    %c0_59 = arith.constant 0 : index
    %c0_60 = arith.constant 0 : index
    %90 = vector.load %arg12[%c0_59, %c0_60] : memref<4x290xf32, #tpu.memory_space<vmem>>, vector<4x17xf32>
    tpu.vector_store %arg12[%c0_59, %c0_60], %89 {strides = array<i32>} : memref<4x290xf32, #tpu.memory_space<vmem>>, vector<4x17xf32>,
    %cst_61 = arith.constant 0.000000e+00 : f32
    %91 = vector.broadcast %cst_61 : f32 to vector<4x17xf32>
    %c0_62 = arith.constant 0 : index
    %c273_63 = arith.constant 273 : index
    %92 = vector.load %arg12[%c0_62, %c273_63] : memref<4x290xf32, #tpu.memory_space<vmem>>, vector<4x17xf32>
    tpu.vector_store %arg12[%c0_62, %c273_63], %91 {strides = array<i32>} : memref<4x290xf32, #tpu.memory_space<vmem>>, vector<4x17xf32>,
    %c0_64 = arith.constant 0 : index
    %c17_65 = arith.constant 17 : index
    %93 = vector.load %arg12[%c0_64, %c17_65] : memref<4x290xf32, #tpu.memory_space<vmem>>, vector<4x256xf32>
    tpu.vector_store %arg12[%c0_64, %c17_65], %88 {strides = array<i32>} : memref<4x290xf32, #tpu.memory_space<vmem>>, vector<4x256xf32>,
    %c0_66 = arith.constant 0 : index
    %c0_67 = arith.constant 0 : index
    %94 = vector.load %arg12[%c0_66, %c0_67] : memref<4x290xf32, #tpu.memory_space<vmem>>, vector<4x256xf32>
    %cst_68 = arith.constant 0.000000e+00 : f32
    %95 = vector.shape_cast %18 : vector<1x256xi1> to vector<1x256xi1>
    %96 = vector.broadcast %95 : vector<1x256xi1> to vector<4x256xi1>
    %97 = vector.broadcast %cst_68 : f32 to vector<4x256xf32>
    %98 = arith.select %96, %94, %97 : vector<4x256xi1>, vector<4x256xf32>
    %c0_69 = arith.constant 0 : index
    %c0_70 = arith.constant 0 : index
    %99 = vector.load %arg14[%c0_69, %c0_70] : memref<36x256xf32, #tpu.memory_space<vmem>>, vector<4x256xf32>
    tpu.vector_store %arg14[%c0_69, %c0_70], %98 {strides = array<i32>} : memref<36x256xf32, #tpu.memory_space<vmem>>, vector<4x256xf32>,
    %c0_71 = arith.constant 0 : index
    %c1_72 = arith.constant 1 : index
    %100 = vector.load %arg12[%c0_71, %c1_72] : memref<4x290xf32, #tpu.memory_space<vmem>>, vector<4x256xf32>
    %c4_73 = arith.constant 4 : index
    %c0_74 = arith.constant 0 : index
    %101 = vector.load %arg14[%c4_73, %c0_74] : memref<36x256xf32, #tpu.memory_space<vmem>>, vector<4x256xf32>
    tpu.vector_store %arg14[%c4_73, %c0_74], %100 {strides = array<i32>} : memref<36x256xf32, #tpu.memory_space<vmem>>, vector<4x256xf32>,
    %c0_75 = arith.constant 0 : index
    %c2_76 = arith.constant 2 : index
    %102 = vector.load %arg12[%c0_75, %c2_76] : memref<4x290xf32, #tpu.memory_space<vmem>>, vector<4x256xf32>
    %cst_77 = arith.constant 0.000000e+00 : f32
    %103 = vector.shape_cast %20 : vector<1x256xi1> to vector<1x256xi1>
    %104 = vector.broadcast %103 : vector<1x256xi1> to vector<4x256xi1>
    %105 = vector.broadcast %cst_77 : f32 to vector<4x256xf32>
    %106 = arith.select %104, %102, %105 : vector<4x256xi1>, vector<4x256xf32>
    %c8_78 = arith.constant 8 : index
    %c0_79 = arith.constant 0 : index
    %107 = vector.load %arg14[%c8_78, %c0_79] : memref<36x256xf32, #tpu.memory_space<vmem>>, vector<4x256xf32>
    tpu.vector_store %arg14[%c8_78, %c0_79], %106 {strides = array<i32>} : memref<36x256xf32, #tpu.memory_space<vmem>>, vector<4x256xf32>,
    %c0_80 = arith.constant 0 : index
    %c16_81 = arith.constant 16 : index
    %108 = vector.load %arg12[%c0_80, %c16_81] : memref<4x290xf32, #tpu.memory_space<vmem>>, vector<4x256xf32>
    %cst_82 = arith.constant 0.000000e+00 : f32
    %109 = vector.shape_cast %18 : vector<1x256xi1> to vector<1x256xi1>
    %110 = vector.broadcast %109 : vector<1x256xi1> to vector<4x256xi1>
    %111 = vector.broadcast %cst_82 : f32 to vector<4x256xf32>
    %112 = arith.select %110, %108, %111 : vector<4x256xi1>, vector<4x256xf32>
    %c12 = arith.constant 12 : index
    %c0_83 = arith.constant 0 : index
    %113 = vector.load %arg14[%c12, %c0_83] : memref<36x256xf32, #tpu.memory_space<vmem>>, vector<4x256xf32>
    tpu.vector_store %arg14[%c12, %c0_83], %112 {strides = array<i32>} : memref<36x256xf32, #tpu.memory_space<vmem>>, vector<4x256xf32>,
    %c0_84 = arith.constant 0 : index
    %c17_85 = arith.constant 17 : index
    %114 = vector.load %arg12[%c0_84, %c17_85] : memref<4x290xf32, #tpu.memory_space<vmem>>, vector<4x256xf32>
    %c16_86 = arith.constant 16 : index
    %c0_87 = arith.constant 0 : index
    %115 = vector.load %arg14[%c16_86, %c0_87] : memref<36x256xf32, #tpu.memory_space<vmem>>, vector<4x256xf32>
    tpu.vector_store %arg14[%c16_86, %c0_87], %114 {strides = array<i32>} : memref<36x256xf32, #tpu.memory_space<vmem>>, vector<4x256xf32>,
    %c0_88 = arith.constant 0 : index
    %c18_89 = arith.constant 18 : index
    %116 = vector.load %arg12[%c0_88, %c18_89] : memref<4x290xf32, #tpu.memory_space<vmem>>, vector<4x256xf32>
    %cst_90 = arith.constant 0.000000e+00 : f32
    %117 = vector.shape_cast %20 : vector<1x256xi1> to vector<1x256xi1>
    %118 = vector.broadcast %117 : vector<1x256xi1> to vector<4x256xi1>
    %119 = vector.broadcast %cst_90 : f32 to vector<4x256xf32>
    %120 = arith.select %118, %116, %119 : vector<4x256xi1>, vector<4x256xf32>
    %c20 = arith.constant 20 : index
    %c0_91 = arith.constant 0 : index
    %121 = vector.load %arg14[%c20, %c0_91] : memref<36x256xf32, #tpu.memory_space<vmem>>, vector<4x256xf32>
    tpu.vector_store %arg14[%c20, %c0_91], %120 {strides = array<i32>} : memref<36x256xf32, #tpu.memory_space<vmem>>, vector<4x256xf32>,
    %c0_92 = arith.constant 0 : index
    %c32_93 = arith.constant 32 : index
    %122 = vector.load %arg12[%c0_92, %c32_93] : memref<4x290xf32, #tpu.memory_space<vmem>>, vector<4x256xf32>
    %cst_94 = arith.constant 0.000000e+00 : f32
    %123 = vector.shape_cast %18 : vector<1x256xi1> to vector<1x256xi1>
    %124 = vector.broadcast %123 : vector<1x256xi1> to vector<4x256xi1>
    %125 = vector.broadcast %cst_94 : f32 to vector<4x256xf32>
    %126 = arith.select %124, %122, %125 : vector<4x256xi1>, vector<4x256xf32>
    %c24_95 = arith.constant 24 : index
    %c0_96 = arith.constant 0 : index
    %127 = vector.load %arg14[%c24_95, %c0_96] : memref<36x256xf32, #tpu.memory_space<vmem>>, vector<4x256xf32>
    tpu.vector_store %arg14[%c24_95, %c0_96], %126 {strides = array<i32>} : memref<36x256xf32, #tpu.memory_space<vmem>>, vector<4x256xf32>,
    %c0_97 = arith.constant 0 : index
    %c33_98 = arith.constant 33 : index
    %128 = vector.load %arg12[%c0_97, %c33_98] : memref<4x290xf32, #tpu.memory_space<vmem>>, vector<4x256xf32>
    %c28 = arith.constant 28 : index
    %c0_99 = arith.constant 0 : index
    %129 = vector.load %arg14[%c28, %c0_99] : memref<36x256xf32, #tpu.memory_space<vmem>>, vector<4x256xf32>
    tpu.vector_store %arg14[%c28, %c0_99], %128 {strides = array<i32>} : memref<36x256xf32, #tpu.memory_space<vmem>>, vector<4x256xf32>,
    %c0_100 = arith.constant 0 : index
    %c34_101 = arith.constant 34 : index
    %130 = vector.load %arg12[%c0_100, %c34_101] : memref<4x290xf32, #tpu.memory_space<vmem>>, vector<4x256xf32>
    %cst_102 = arith.constant 0.000000e+00 : f32
    %131 = vector.shape_cast %20 : vector<1x256xi1> to vector<1x256xi1>
    %132 = vector.broadcast %131 : vector<1x256xi1> to vector<4x256xi1>
    %133 = vector.broadcast %cst_102 : f32 to vector<4x256xf32>
    %134 = arith.select %132, %130, %133 : vector<4x256xi1>, vector<4x256xf32>
    %c32_103 = arith.constant 32 : index
    %c0_104 = arith.constant 0 : index
    %135 = vector.load %arg14[%c32_103, %c0_104] : memref<36x256xf32, #tpu.memory_space<vmem>>, vector<4x256xf32>
    tpu.vector_store %arg14[%c32_103, %c0_104], %134 {strides = array<i32>} : memref<36x256xf32, #tpu.memory_space<vmem>>, vector<4x256xf32>,
    %c0_105 = arith.constant 0 : index
    %c0_106 = arith.constant 0 : index
    %136 = vector.load %arg7[%c0_105, %c0_106] : memref<4x36xf32, #tpu.memory_space<vmem>>, vector<4x36xf32>
    %c0_107 = arith.constant 0 : index
    %c0_108 = arith.constant 0 : index
    %137 = vector.load %arg14[%c0_107, %c0_108] : memref<36x256xf32, #tpu.memory_space<vmem>>, vector<36x256xf32>
    %cst_109 = arith.constant dense<0.000000e+00> : vector<4x256xf32>
    %138 = tpu.matmul %136, %137, %cst_109 {dimension_numbers = #tpu.dot_dimension_numbers<[1], [0], [0], [1], [0, 0, 1, 1], [], []>} : vector<4x36xf32>, vector<36x256xf32>, vector<4x256xf32> -> vector<4x256xf32>
    %c0_110 = arith.constant 0 : index
    %c0_111 = arith.constant 0 : index
    %139 = vector.load %arg8[%c0_110, %c0_111] : memref<4x1xf32, #tpu.memory_space<vmem>>, vector<4x1xf32>
    %140 = vector.broadcast %139 : vector<4x1xf32> to vector<4x256xf32>
    %141 = arith.mulf %138, %140 : vector<4x256xf32>
    %c0_112 = arith.constant 0 : index
    %c0_113 = arith.constant 0 : index
    %142 = vector.load %arg9[%c0_112, %c0_113] : memref<4x1xf32, #tpu.memory_space<vmem>>, vector<4x1xf32>
    %143 = vector.broadcast %142 : vector<4x1xf32> to vector<4x256xf32>
    %144 = arith.addf %141, %143 : vector<4x256xf32>
    %cst_114 = arith.constant 0.000000e+00 : f32
    %145 = vector.broadcast %cst_114 : f32 to vector<4x256xf32>
    %146 = arith.cmpf ogt, %144, %145 : vector<4x256xf32>
    %cst_115 = arith.constant 1.000000e-01 : f32
    %147 = vector.broadcast %cst_115 : f32 to vector<4x256xf32>
    %148 = arith.mulf %147, %144 : vector<4x256xf32>
    %149 = arith.select %146, %144, %148 : vector<4x256xi1>, vector<4x256xf32>
    %c0_116 = arith.constant 0 : index
    %c0_117 = arith.constant 0 : index
    %c0_118 = arith.constant 0 : index
    %150 = vector.load %arg10[%c0_116, %c0_117, %c0_118] : memref<1x4x256xf32, #tpu.memory_space<vmem>>, vector<1x4x256xf32>
    %151 = vector.shape_cast %150 : vector<1x4x256xf32> to vector<4x256xf32>
    %152 = vector.shape_cast %149 : vector<4x256xf32> to vector<1x4x256xf32>
    tpu.vector_store %arg10[%c0_116, %c0_117, %c0_118], %152 {strides = array<i32>} : memref<1x4x256xf32, #tpu.memory_space<vmem>>, vector<1x4x256xf32>,
    return
  }
  func.func @transform_0(%arg0: i32) -> (i32, i32, i32) {
    %c0_i32 = arith.constant 0 : i32
    %c0_i32_0 = arith.constant 0 : i32
    %c0_i32_1 = arith.constant 0 : i32
    return %arg0, %c0_i32, %c0_i32_0 : i32, i32, i32
  }
  func.func @transform_1(%arg0: i32) -> (i32, i32, i32) {
    %c0_i32 = arith.constant 0 : i32
    %c0_i32_0 = arith.constant 0 : i32
    %c0_i32_1 = arith.constant 0 : i32
    return %arg0, %c0_i32, %c0_i32_0 : i32, i32, i32
  }
  func.func @transform_2(%arg0: i32) -> (i32, i32) {
    %c0_i32 = arith.constant 0 : i32
    %c0_i32_0 = arith.constant 0 : i32
    %c0_i32_1 = arith.constant 0 : i32
    return %c0_i32, %c0_i32_0 : i32, i32
  }
  func.func @transform_3(%arg0: i32) -> (i32, i32) {
    %c0_i32 = arith.constant 0 : i32
    %c0_i32_0 = arith.constant 0 : i32
    %c0_i32_1 = arith.constant 0 : i32
    return %c0_i32, %c0_i32_0 : i32, i32
  }
  func.func @transform_4(%arg0: i32) -> (i32, i32) {
    %c0_i32 = arith.constant 0 : i32
    %c0_i32_0 = arith.constant 0 : i32
    %c0_i32_1 = arith.constant 0 : i32
    return %c0_i32, %c0_i32_0 : i32, i32
  }
  func.func @transform_5(%arg0: i32) -> (i32, i32) {
    %c0_i32 = arith.constant 0 : i32
    %c0_i32_0 = arith.constant 0 : i32
    %c0_i32_1 = arith.constant 0 : i32
    return %c0_i32, %c0_i32_0 : i32, i32
  }
  func.func @transform_6(%arg0: i32) -> (i32, i32) {
    %c0_i32 = arith.constant 0 : i32
    %c0_i32_0 = arith.constant 0 : i32
    %c0_i32_1 = arith.constant 0 : i32
    return %c0_i32, %c0_i32_0 : i32, i32
  }
  func.func @transform_7(%arg0: i32) -> (i32, i32) {
    %c0_i32 = arith.constant 0 : i32
    %c0_i32_0 = arith.constant 0 : i32
    %c0_i32_1 = arith.constant 0 : i32
    return %c0_i32, %c0_i32_0 : i32, i32
  }
  func.func @transform_8(%arg0: i32) -> (i32, i32) {
    %c0_i32 = arith.constant 0 : i32
    %c0_i32_0 = arith.constant 0 : i32
    %c0_i32_1 = arith.constant 0 : i32
    return %c0_i32, %c0_i32_0 : i32, i32
  }
  func.func @transform_9(%arg0: i32) -> (i32, i32, i32) {
    %c0_i32 = arith.constant 0 : i32
    %c0_i32_0 = arith.constant 0 : i32
    %c0_i32_1 = arith.constant 0 : i32
    return %arg0, %c0_i32, %c0_i32_0 : i32, i32, i32
  }
}

</mosaic_0001>

<llo_original>
// kernel: tpu_custom_call.1
$region0: #{tpu_custom_call.1}
  #allocation0 [shape = 'u32[]', space=smem, size = 0x4, offset = 0x4, fixed_abs, tag = 'smem constant byte address 0x4 - core index']
  #allocation1 [shape = 'u32[144,128]{1,0:T(1,128)}', space=vmem, size = 0x12000, scoped, tag = 'internal scratch']
  #allocation2 [shape = 'f32[8,290]{1,0:T(8,128)}', space=vmem, size = 0x3000, scoped, tag = 'scratch operand']
  #allocation3 [shape = 'f32[4,290]{1,0:T(4,128)}', space=vmem, size = 0x1800, scoped, tag = 'scratch operand']
  #allocation4 [shape = 'f32[72,256]{1,0:T(8,128)}', space=vmem, size = 0x12000, scoped, tag = 'scratch operand']
  #allocation5 [shape = 'f32[36,256]{1,0:T(8,128)}', space=vmem, size = 0xa000, scoped, tag = 'scratch operand']
  %s0 = inlined_call_operand.hbm [shape: f32[2,4,64], index: 0, kind: input, shape index: {}]
  %s1 = inlined_call_operand.vmem [shape: f32[2,4,256], index: 1, kind: input, shape index: {}]
  %s2 = inlined_call_operand.hbm [shape: f32[64,256], index: 2, kind: input, shape index: {}]
  %s3 = inlined_call_operand.vmem [shape: f32[4,72], index: 3, kind: input, shape index: {}]
  %s4 = inlined_call_operand.vmem [shape: f32[4,1], index: 4, kind: input, shape index: {}]
  %s5 = inlined_call_operand.vmem [shape: f32[4,1], index: 5, kind: input, shape index: {}]
  %s6 = inlined_call_operand.vmem [shape: f32[4,36], index: 6, kind: input, shape index: {}]
  %s7 = inlined_call_operand.vmem [shape: f32[4,1], index: 7, kind: input, shape index: {}]
  %s8 = inlined_call_operand.vmem [shape: f32[4,1], index: 8, kind: input, shape index: {}]
  %s9 = inlined_call_operand.hbm [shape: f32[2,4,256], index: 9, kind: output, shape index: {}]
  %s10 = sld [smem:[#allocation0]]
  $region77: #{tpu_custom_call.1} parent=0
    _
  %s12 = ssub.s32 1, %s10
  %s13 = scalar_select 0, %s12, %s10
  $region1: #{tpu_custom_call.1} parent=0
    #allocation6 [shape = 'u8[4096]{0}', space=vmem, size = 0x1000, scoped, tag = 'input window, operand 0']
    #allocation7 [shape = 's32[2]{0}', space=sflag, size = 0x8, scoped, tag = 'scoped memory for tpu_custom_call.1']
    #allocation8 [shape = 's32[2]{0}', space=sflag, size = 0x8, scoped, tag = 'scoped memory for tpu_custom_call.1']
    #allocation9 [shape = 'u8[65536]{0}', space=vmem, size = 0x10000, scoped, tag = 'input window, operand 2, single buffered']
    #allocation10 [shape = 's32[1]{0}', space=sflag, size = 0x4, scoped, tag = 'scoped memory for tpu_custom_call.1']
    #allocation11 [shape = 'u8[8192]{0}', space=vmem, size = 0x2000, scoped, tag = 'output window, operand 0']
    %14 = vsyncpa [#allocation7], 0
    %s15 = scalar_lea.sflag [#allocation7], 1
    %16 = vsyncpa %s15, 0
    %17 = vsyncpa [#allocation10], 0
    %18 = vsyncpa [#allocation8], 0
    %s19 = scalar_lea.sflag [#allocation8], 1
    %20 = vsyncpa %s19, 0
    loop: start=0, step=1, limit=4
    $region2: #{tpu_custom_call.1} parent=1 // loop_pre_header
      _
    $region3: #{tpu_custom_call.1} parent=1 // loop_header
      %s22 = sphi 0, %s26
      %p23 = scmp.ge.s32.totalorder %s22, 4
      %s32 = sphi 0, %s34
      %s35 = sphi 0, %s32
      %s36 = sphi 0, %s35
      %s52 = sphi 0, %s36
      %s58 = sphi 0, %s60
      %s61 = sphi 0, %s58
      %s62 = sphi 0, %s61
      %s78 = sphi 0, %s62
      %s82 = sphi 0, %s82
      %s84 = sphi 0, %s82
      %s85 = sphi 0, %s84
      %s99 = sphi 0, %s85
      %s103 = sphi 0, %s103
      %s105 = sphi 0, %s103
      %s106 = sphi 0, %s105
      %s120 = sphi 0, %s106
      %s124 = sphi 0, %s124
      %s126 = sphi 0, %s124
      %s127 = sphi 0, %s126
      %s141 = sphi 0, %s127
      %s145 = sphi 0, %s145
      %s147 = sphi 0, %s145
      %s148 = sphi 0, %s147
      %s162 = sphi 0, %s148
      %s166 = sphi 0, %s166
      %s168 = sphi 0, %s166
      %s169 = sphi 0, %s168
      %s183 = sphi 0, %s169
      %s187 = sphi 0, %s187
      %s189 = sphi 0, %s187
      %s190 = sphi 0, %s189
      %s204 = sphi 0, %s190
      %s208 = sphi 0, %s208
      %s210 = sphi 0, %s208
      %s211 = sphi 0, %s210
      %s225 = sphi 0, %s211
      %s231 = sphi 0, %s233
      %s234 = sphi 0, %s231
      %s235 = sphi 0, %s234
      %s251 = sphi 0, %s235
    $region4: #{tpu_custom_call.1} parent=1 // loop_header_branch
      %25 = sbr.rel (%p23) target = $region8
    $region5: #{tpu_custom_call.1} parent=1 // loop_body
      %s27 = ssub.s32 %s22, 1
      %s28 = ssub.s32 %s22, 2
      %s29 = sadd.s32 %s22, 1
      %s30 = ssub.s32 %s22, %s29
      %p31 = scmp.eq.s32.totalorder %s30, 0
      %s33 = sadd.s32 %s32, 1
      %s34 = scalar_select %p31, %s32, %s33
      %p37 = pneg %p31
      %p38 = scmp.eq.s32.totalorder %s22, 1
      %p39 = por %p37, %p38
      %p40 = scmp.ne.s32.totalorder %s32, %s35
      %p41 = scmp.eq.s32.totalorder %s22, 0
      %p42 = por %p40, %p41
      %p43 = scmp.ne.s32.totalorder %s32, %s35
      %p44 = scmp.eq.s32.totalorder %s27, 1
      %p45 = por %p43, %p44
      %p46 = scmp.ne.s32.totalorder %s35, %s36
      %p47 = scmp.eq.s32.totalorder %s27, 0
      %p48 = por %p46, %p47
      %p49 = scmp.ne.s32.totalorder %s35, %s36
      %p50 = scmp.eq.s32.totalorder %s28, 1
      %p51 = por %p49, %p50
      %p53 = scmp.ne.s32.totalorder %s36, %s52
      %p54 = scmp.eq.s32.totalorder %s28, 0
      %p55 = por %p53, %p54
      %s56 = ssub.s32 %s22, %s29
      %p57 = scmp.eq.s32.totalorder %s56, 0
      %s59 = sadd.s32 %s58, 1
      %s60 = scalar_select %p57, %s58, %s59
      %p63 = pneg %p57
      %p64 = scmp.eq.s32.totalorder %s22, 1
      %p65 = por %p63, %p64
      %p66 = scmp.ne.s32.totalorder %s58, %s61
      %p67 = scmp.eq.s32.totalorder %s22, 0
      %p68 = por %p66, %p67
      %p69 = scmp.ne.s32.totalorder %s58, %s61
      %p70 = scmp.eq.s32.totalorder %s27, 1
      %p71 = por %p69, %p70
      %p72 = scmp.ne.s32.totalorder %s61, %s62
      %p73 = scmp.eq.s32.totalorder %s27, 0
      %p74 = por %p72, %p73
      %p75 = scmp.ne.s32.totalorder %s61, %s62
      %p76 = scmp.eq.s32.totalorder %s28, 1
      %p77 = por %p75, %p76
      %p79 = scmp.ne.s32.totalorder %s62, %s78
      %p80 = scmp.eq.s32.totalorder %s28, 0
      %p81 = por %p79, %p80
      %s83 = sadd.s32 %s82, 1
      %p86 = scmp.eq.s32.totalorder %s22, 1
      %p87 = scmp.ne.s32.totalorder %s82, %s84
      %p88 = scmp.eq.s32.totalorder %s22, 0
      %p89 = por %p87, %p88
      %p90 = scmp.ne.s32.totalorder %s82, %s84
      %p91 = scmp.eq.s32.totalorder %s27, 1
      %p92 = por %p90, %p91
      %p93 = scmp.ne.s32.totalorder %s84, %s85
      %p94 = scmp.eq.s32.totalorder %s27, 0
      %p95 = por %p93, %p94
      %p96 = scmp.ne.s32.totalorder %s84, %s85
      %p97 = scmp.eq.s32.totalorder %s28, 1
      %p98 = por %p96, %p97
      %p100 = scmp.ne.s32.totalorder %s85, %s99
      %p101 = scmp.eq.s32.totalorder %s28, 0
      %p102 = por %p100, %p101
      %s104 = sadd.s32 %s103, 1
      %p107 = scmp.eq.s32.totalorder %s22, 1
      %p108 = scmp.ne.s32.totalorder %s103, %s105
      %p109 = scmp.eq.s32.totalorder %s22, 0
      %p110 = por %p108, %p109
      %p111 = scmp.ne.s32.totalorder %s103, %s105
      %p112 = scmp.eq.s32.totalorder %s27, 1
      %p113 = por %p111, %p112
      %p114 = scmp.ne.s32.totalorder %s105, %s106
      %p115 = scmp.eq.s32.totalorder %s27, 0
      %p116 = por %p114, %p115
      %p117 = scmp.ne.s32.totalorder %s105, %s106
      %p118 = scmp.eq.s32.totalorder %s28, 1
      %p119 = por %p117, %p118
      %p121 = scmp.ne.s32.totalorder %s106, %s120
      %p122 = scmp.eq.s32.totalorder %s28, 0
      %p123 = por %p121, %p122
      %s125 = sadd.s32 %s124, 1
      %p128 = scmp.eq.s32.totalorder %s22, 1
      %p129 = scmp.ne.s32.totalorder %s124, %s126
      %p130 = scmp.eq.s32.totalorder %s22, 0
      %p131 = por %p129, %p130
      %p132 = scmp.ne.s32.totalorder %s124, %s126
      %p133 = scmp.eq.s32.totalorder %s27, 1
      %p134 = por %p132, %p133
      %p135 = scmp.ne.s32.totalorder %s126, %s127
      %p136 = scmp.eq.s32.totalorder %s27, 0
      %p137 = por %p135, %p136
      %p138 = scmp.ne.s32.totalorder %s126, %s127
      %p139 = scmp.eq.s32.totalorder %s28, 1
      %p140 = por %p138, %p139
      %p142 = scmp.ne.s32.totalorder %s127, %s141
      %p143 = scmp.eq.s32.totalorder %s28, 0
      %p144 = por %p142, %p143
      %s146 = sadd.s32 %s145, 1
      %p149 = scmp.eq.s32.totalorder %s22, 1
      %p150 = scmp.ne.s32.totalorder %s145, %s147
      %p151 = scmp.eq.s32.totalorder %s22, 0
      %p152 = por %p150, %p151
      %p153 = scmp.ne.s32.totalorder %s145, %s147
      %p154 = scmp.eq.s32.totalorder %s27, 1
      %p155 = por %p153, %p154
      %p156 = scmp.ne.s32.totalorder %s147, %s148
      %p157 = scmp.eq.s32.totalorder %s27, 0
      %p158 = por %p156, %p157
      %p159 = scmp.ne.s32.totalorder %s147, %s148
      %p160 = scmp.eq.s32.totalorder %s28, 1
      %p161 = por %p159, %p160
      %p163 = scmp.ne.s32.totalorder %s148, %s162
      %p164 = scmp.eq.s32.totalorder %s28, 0
      %p165 = por %p163, %p164
      %s167 = sadd.s32 %s166, 1
      %p170 = scmp.eq.s32.totalorder %s22, 1
      %p171 = scmp.ne.s32.totalorder %s166, %s168
      %p172 = scmp.eq.s32.totalorder %s22, 0
      %p173 = por %p171, %p172
      %p174 = scmp.ne.s32.totalorder %s166, %s168
      %p175 = scmp.eq.s32.totalorder %s27, 1
      %p176 = por %p174, %p175
      %p177 = scmp.ne.s32.totalorder %s168, %s169
      %p178 = scmp.eq.s32.totalorder %s27, 0
      %p179 = por %p177, %p178
      %p180 = scmp.ne.s32.totalorder %s168, %s169
      %p181 = scmp.eq.s32.totalorder %s28, 1
      %p182 = por %p180, %p181
      %p184 = scmp.ne.s32.totalorder %s169, %s183
      %p185 = scmp.eq.s32.totalorder %s28, 0
      %p186 = por %p184, %p185
      %s188 = sadd.s32 %s187, 1
      %p191 = scmp.eq.s32.totalorder %s22, 1
      %p192 = scmp.ne.s32.totalorder %s187, %s189
      %p193 = scmp.eq.s32.totalorder %s22, 0
      %p194 = por %p192, %p193
      %p195 = scmp.ne.s32.totalorder %s187, %s189
      %p196 = scmp.eq.s32.totalorder %s27, 1
      %p197 = por %p195, %p196
      %p198 = scmp.ne.s32.totalorder %s189, %s190
      %p199 = scmp.eq.s32.totalorder %s27, 0
      %p200 = por %p198, %p199
      %p201 = scmp.ne.s32.totalorder %s189, %s190
      %p202 = scmp.eq.s32.totalorder %s28, 1
      %p203 = por %p201, %p202
      %p205 = scmp.ne.s32.totalorder %s190, %s204
      %p206 = scmp.eq.s32.totalorder %s28, 0
      %p207 = por %p205, %p206
      %s209 = sadd.s32 %s208, 1
      %p212 = scmp.eq.s32.totalorder %s22, 1
      %p213 = scmp.ne.s32.totalorder %s208, %s210
      %p214 = scmp.eq.s32.totalorder %s22, 0
      %p215 = por %p213, %p214
      %p216 = scmp.ne.s32.totalorder %s208, %s210
      %p217 = scmp.eq.s32.totalorder %s27, 1
      %p218 = por %p216, %p217
      %p219 = scmp.ne.s32.totalorder %s210, %s211
      %p220 = scmp.eq.s32.totalorder %s27, 0
      %p221 = por %p219, %p220
      %p222 = scmp.ne.s32.totalorder %s210, %s211
      %p223 = scmp.eq.s32.totalorder %s28, 1
      %p224 = por %p222, %p223
      %p226 = scmp.ne.s32.totalorder %s211, %s225
      %p227 = scmp.eq.s32.totalorder %s28, 0
      %p228 = por %p226, %p227
      %s229 = ssub.s32 %s22, %s29
      %p230 = scmp.eq.s32.totalorder %s229, 0
      %s232 = sadd.s32 %s231, 1
      %s233 = scalar_select %p230, %s231, %s232
      %p236 = pneg %p230
      %p237 = scmp.eq.s32.totalorder %s22, 1
      %p238 = por %p236, %p237
      %p239 = scmp.ne.s32.totalorder %s231, %s234
      %p240 = scmp.eq.s32.totalorder %s22, 0
      %p241 = por %p239, %p240
      %p242 = scmp.ne.s32.totalorder %s231, %s234
      %p243 = scmp.eq.s32.totalorder %s27, 1
      %p244 = por %p242, %p243
      %p245 = scmp.ne.s32.totalorder %s234, %s235
      %p246 = scmp.eq.s32.totalorder %s27, 0
      %p247 = por %p245, %p246
      %p248 = scmp.ne.s32.totalorder %s234, %s235
      %p249 = scmp.eq.s32.totalorder %s28, 1
      %p250 = por %p248, %p249
      %p252 = scmp.ne.s32.totalorder %s235, %s251
      %p253 = scmp.eq.s32.totalorder %s28, 0
      %p254 = por %p252, %p253
      %p255 = scmp.le.s32.totalorder 1, %s22
      %p256 = scmp.lt.s32.totalorder %s22, 3
      %p257 = pnand %p255, %p256
      %p258 = pneg %p257
      // Predicated region
      $region9: #{tpu_custom_call.1} parent=5 // pred_check
        _
      $region10: #{tpu_custom_call.1} parent=5 // pred_check_branch
        %260 = sbr.rel (%p257) target = $region12
      $region11: #{tpu_custom_call.1} parent=5 // pred_region
        %s261 = ssub.s32 %s22, 1
        // Predicated region
        $region13: #{tpu_custom_call.1} parent=11 // pred_check
          %p262 = pneg %p95
        $region14: #{tpu_custom_call.1} parent=11 // pred_check_branch
          %264 = sbr.rel (%p262) target = $region16
        $region15: #{tpu_custom_call.1} parent=11 // pred_region
          %s266 = ssub.s32 2048, 2048
          %267 = vsyncadd [#allocation10], %s266
          %s268 = sshll.u32 [#allocation9], 4
          %s269 = int_to_ptr.vmem [resolvable:$true] %s268
          %274 = dma.hbm_to_vmem [thread:$0]  %s2, 2048, %s269, [#allocation10], 256, 256, 16
        $region16: #{tpu_custom_call.1} parent=11 // pred_fallthru
          _
        // Predicated region
        $region17: #{tpu_custom_call.1} parent=11 // pred_check
          %p275 = pneg %p116
        $region18: #{tpu_custom_call.1} parent=11 // pred_check_branch
          %277 = sbr.rel (%p275) target = $region20
        $region19: #{tpu_custom_call.1} parent=11 // pred_region
          _
        $region20: #{tpu_custom_call.1} parent=11 // pred_fallthru
          _
        // Predicated region
        $region21: #{tpu_custom_call.1} parent=11 // pred_check
          %p278 = pneg %p137
        $region22: #{tpu_custom_call.1} parent=11 // pred_check_branch
          %280 = sbr.rel (%p278) target = $region24
        $region23: #{tpu_custom_call.1} parent=11 // pred_region
          _
        $region24: #{tpu_custom_call.1} parent=11 // pred_fallthru
          _
        // Predicated region
        $region25: #{tpu_custom_call.1} parent=11 // pred_check
          %p281 = pneg %p158
        $region26: #{tpu_custom_call.1} parent=11 // pred_check_branch
          %283 = sbr.rel (%p281) target = $region28
        $region27: #{tpu_custom_call.1} parent=11 // pred_region
          _
        $region28: #{tpu_custom_call.1} parent=11 // pred_fallthru
          _
        // Predicated region
        $region29: #{tpu_custom_call.1} parent=11 // pred_check
          %p284 = pneg %p179
        $region30: #{tpu_custom_call.1} parent=11 // pred_check_branch
          %286 = sbr.rel (%p284) target = $region32
        $region31: #{tpu_custom_call.1} parent=11 // pred_region
          _
        $region32: #{tpu_custom_call.1} parent=11 // pred_fallthru
          _
        // Predicated region
        $region33: #{tpu_custom_call.1} parent=11 // pred_check
          %p287 = pneg %p200
        $region34: #{tpu_custom_call.1} parent=11 // pred_check_branch
          %289 = sbr.rel (%p287) target = $region36
        $region35: #{tpu_custom_call.1} parent=11 // pred_region
          _
        $region36: #{tpu_custom_call.1} parent=11 // pred_fallthru
          _
        // Predicated region
        $region37: #{tpu_custom_call.1} parent=11 // pred_check
          %p290 = pneg %p221
        $region38: #{tpu_custom_call.1} parent=11 // pred_check_branch
          %292 = sbr.rel (%p290) target = $region40
        $region39: #{tpu_custom_call.1} parent=11 // pred_region
          _
        $region40: #{tpu_custom_call.1} parent=11 // pred_fallthru
          _
      $region12: #{tpu_custom_call.1} parent=5 // pred_fallthru
        _
      %p293 = scmp.lt.s32.totalorder %s22, 2
      // Predicated region
      $region41: #{tpu_custom_call.1} parent=5 // pred_check
        %p294 = pneg %p293
      $region42: #{tpu_custom_call.1} parent=5 // pred_check_branch
        %296 = sbr.rel (%p294) target = $region44
      $region43: #{tpu_custom_call.1} parent=5 // pred_region
        // Predicated region
        $region45: #{tpu_custom_call.1} parent=43 // pred_check
          %p297 = pneg %p42
        $region46: #{tpu_custom_call.1} parent=43 // pred_check_branch
          %299 = sbr.rel (%p297) target = $region48
        $region47: #{tpu_custom_call.1} parent=43 // pred_region
          %s300 = sand.u32 %s32, 1
          %s301 = scalar_lea.sflag [#allocation7], %s300
          %s302 = sand.u32 %s32, 1
          %s303 = smul.addr %s302, 4
          %s304 = scalar_lea.vmem [#allocation6], %s303
          %s306 = ssub.s32 64, 64
          %307 = vsyncadd %s301, %s306
          %s308 = smul.addr %s22, 64
          %s309 = scalar_lea.hbm %s0, %s308
          %s311 = sshll.u32 %s304, 4
          %s312 = int_to_ptr.vmem [resolvable:$true] %s311
          %314 = dma.hbm_to_vmem [thread:$0]  %s309, 64, %s312, %s301
        $region48: #{tpu_custom_call.1} parent=43 // pred_fallthru
          _
        // Predicated region
        $region49: #{tpu_custom_call.1} parent=43 // pred_check
          %p315 = pneg %p68
        $region50: #{tpu_custom_call.1} parent=43 // pred_check_branch
          %317 = sbr.rel (%p315) target = $region52
        $region51: #{tpu_custom_call.1} parent=43 // pred_region
          %p318 = scmp.lt.s32.totalorder %s22, 1
          %s319 = scalar_select %p318, %s22, 1
          %s320 = smul.addr %s319, 2
          %s321 = smul.addr %s320, 4
          %s322 = scalar_lea.vmem %s1, %s321
        $region52: #{tpu_custom_call.1} parent=43 // pred_fallthru
          _
      $region44: #{tpu_custom_call.1} parent=5 // pred_fallthru
        _
      %p323 = scmp.le.s32.totalorder 1, %s22
      %p324 = scmp.lt.s32.totalorder %s22, 3
      %p325 = pnand %p323, %p324
      %p326 = pneg %p325
      // Predicated region
      $region53: #{tpu_custom_call.1} parent=5 // pred_check
        _
      $region54: #{tpu_custom_call.1} parent=5 // pred_check_branch
        %328 = sbr.rel (%p325) target = $region56
      $region55: #{tpu_custom_call.1} parent=5 // pred_region
        %s329 = ssub.s32 %s22, 1
        %s330 = sand.u32 %s35, 1
        %s331 = scalar_lea.sflag [#allocation7], %s330
        %s332 = sand.u32 %s35, 1
        %s333 = smul.addr %s332, 4
        %s334 = scalar_lea.vmem [#allocation6], %s333
        // Predicated region
        $region57: #{tpu_custom_call.1} parent=55 // pred_check
          %p335 = pneg %p48
        $region58: #{tpu_custom_call.1} parent=55 // pred_check_branch
          %337 = sbr.rel (%p335) target = $region60
        $region59: #{tpu_custom_call.1} parent=55 // pred_region
          %338 = dma.done %s331, 64
        $region60: #{tpu_custom_call.1} parent=55 // pred_fallthru
          _
        // Predicated region
        $region61: #{tpu_custom_call.1} parent=55 // pred_check
          %p339 = pneg %p95
        $region62: #{tpu_custom_call.1} parent=55 // pred_check_branch
          %341 = sbr.rel (%p339) target = $region64
        $region63: #{tpu_custom_call.1} parent=55 // pred_region
          %342 = dma.done [#allocation10], 2048
        $region64: #{tpu_custom_call.1} parent=55 // pred_fallthru
          _
        %s343 = sand.u32 %s35, 1
        %s344 = scalar_lea.sflag [#allocation7], %s343
        %s345 = sand.u32 %s35, 1
        %s346 = smul.addr %s345, 4
        %s347 = scalar_lea.vmem [#allocation6], %s346
        %p348 = pneg %p48
        %p349 = pneg %p45
        %p350 = scmp.lt.s32.totalorder %s27, 1
        %s351 = scalar_select %p350, %s27, 1
        %s352 = smul.addr %s351, 2
        %s353 = smul.addr %s352, 4
        %s354 = scalar_lea.vmem %s1, %s353
        %p355 = pneg %p74
        %p356 = pneg %p71
        %p357 = pneg %p95
        %p358 = pneg %p92
        %p359 = pneg %p116
        %p360 = pneg %p113
        %p361 = pneg %p137
        %p362 = pneg %p134
        %p363 = pneg %p158
        %p364 = pneg %p155
        %p365 = pneg %p179
        %p366 = pneg %p176
        %p367 = pneg %p200
        %p368 = pneg %p197
        %p369 = pneg %p221
        %p370 = pneg %p218
        %p371 = pneg %p247
        %p372 = pneg %p244
        %s373 = sand.u32 %s234, 1
        %s374 = scalar_lea.sflag [#allocation8], %s373
        %s375 = sand.u32 %s234, 1
        %s376 = smul.addr %s375, 8
        %s377 = scalar_lea.vmem [#allocation11], %s376
        %p378 = scmp.lt.s32.totalorder %s27, 1
        %s379 = scalar_select %p378, %s27, 1
        %s380 = smul.addr %s379, 2
        %s381 = smul.addr %s380, 4
        %s382 = scalar_lea.vmem %s1, %s381
        %v383 = vlaneseq
        %v384 = vand.u32 %v383, 127
        %v385 = vadd.s32 %v384, 128
        %vm386 = vcmp.lt.s32.totalorder %v384, 0
        %v387 = vsub.s32 0, %v384
        %v388 = vsel %vm386, %v387, %v384
        %v389 = vshrl.u32 %v388, 4
        %v390 = vand.u32 %v388, 15
        %v391 = vsub.s32 0, %v390
        %v392 = vsel %vm386, %v391, %v390
        %vm393 = vcmp.lt.s32.totalorder %v385, 0
        %v394 = vsub.s32 0, %v385
        %v395 = vsel %vm393, %v394, %v385
        %v396 = vshrl.u32 %v395, 4
        %v397 = vand.u32 %v395, 15
        %v398 = vsub.s32 0, %v397
        %v399 = vsel %vm393, %v398, %v397
        %vm400 = vcmp.ne.s32.totalorder %v392, 0
        %vm401 = vcmp.ne.s32.totalorder %v399, 0
        %vm402 = vcmp.lt.s32.totalorder %v392, 0
        %vm403 = vcmp.lt.s32.totalorder %v399, 0
        %vm404 = vmand %vm402, %vm400
        %vm405 = vmand %vm403, %vm401
        %v406 = vadd.s32 %v392, 16
        %v407 = vadd.s32 %v399, 16
        %v408 = vsel %vm404, %v406, %v392
        %v409 = vsel %vm405, %v407, %v399
        %vm410 = vcmp.ne.s32.totalorder %v408, 0
        %vm411 = vcmp.ne.s32.totalorder %v409, 0
        %vm412 = vcmp.ne.s32.totalorder %v408, 15
        %vm413 = vcmp.ne.s32.totalorder %v409, 15
        %v414 = vld [vmem:[%s334] sm:$0xf]
        %v415 = vld [vmem:[#allocation9] sm:$0xff]
        %v416 = vld [vmem:[#allocation9 + $0x8] sm:$0xff]
        %v417 = vld [vmem:[#allocation9 + $0x10] sm:$0xff]
        %v418 = vld [vmem:[#allocation9 + $0x18] sm:$0xff]
        %v419 = vld [vmem:[#allocation9 + $0x20] sm:$0xff]
        %v420 = vld [vmem:[#allocation9 + $0x28] sm:$0xff]
        %v421 = vld [vmem:[#allocation9 + $0x30] sm:$0xff]
        %v422 = vld [vmem:[#allocation9 + $0x38] sm:$0xff]
        %v423 = vld [vmem:[#allocation9 + $0x40] sm:$0xff]
        %v424 = vld [vmem:[#allocation9 + $0x48] sm:$0xff]
        %v425 = vld [vmem:[#allocation9 + $0x50] sm:$0xff]
        %v426 = vld [vmem:[#allocation9 + $0x58] sm:$0xff]
        %v427 = vld [vmem:[#allocation9 + $0x60] sm:$0xff]
        %v428 = vld [vmem:[#allocation9 + $0x68] sm:$0xff]
        %v429 = vld [vmem:[#allocation9 + $0x70] sm:$0xff]
        %v430 = vld [vmem:[#allocation9 + $0x78] sm:$0xff]
        %vm431 = vcmask 523264
        %v433 = vsel %vm431, %v414, 0
        %435 = vmatprep.subr.mxu0 %v416
        %436 = vmatpush1.msra.mxu0 %v415
        %437 = vmatprep.subr.mxu0 %v418
        %438 = vmatpush1.msra.mxu0 %v417
        %439 = vmatprep.subr.mxu0 %v420
        %440 = vmatpush1.msra.mxu0 %v419
        %441 = vmatprep.subr.mxu0 %v422
        %442 = vmatpush1.msra.mxu0 %v421
        %443 = vmatprep.subr.mxu0 %v424
        %444 = vmatpush1.msra.mxu0 %v423
        %445 = vmatprep.subr.mxu0 %v426
        %446 = vmatpush1.msra.mxu0 %v425
        %447 = vmatprep.subr.mxu0 %v428
        %448 = vmatpush1.msra.mxu0 %v427
        %449 = vmatprep.subr.mxu0 %v430
        %450 = vmatpush1.msra.mxu0 %v429
        %451 = vmatprep.subr.mxu0 0.0
        %452 = vmatpush1.msra.mxu0 0.0
        %453 = vmatprep.subr.mxu0 0.0
        %454 = vmatpush1.msra.mxu0 0.0
        %455 = vmatprep.subr.mxu0 0.0
        %456 = vmatpush1.msra.mxu0 0.0
        %457 = vmatprep.subr.mxu0 0.0
        %458 = vmatpush1.msra.mxu0 0.0
        %459 = vmatprep.subr.mxu0 0.0
        %460 = vmatpush1.msra.mxu0 0.0
        %461 = vmatprep.subr.mxu0 0.0
        %462 = vmatpush1.msra.mxu0 0.0
        %463 = vmatprep.subr.mxu0 0.0
        %464 = vmatpush1.msra.mxu0 0.0
        %465 = vmatprep.subr.mxu0 0.0
        %466 = vmatpush1.msra.mxu0 0.0
        %467 = vmatprep.subr.mxu0 0.0
        %468 = vmatpush1.msra.mxu0 0.0
        %469 = vmatprep.subr.mxu0 0.0
        %470 = vmatpush1.msra.mxu0 0.0
        %471 = vmatprep.subr.mxu0 0.0
        %472 = vmatpush1.msra.mxu0 0.0
        %473 = vmatprep.subr.mxu0 0.0
        %474 = vmatpush1.msra.mxu0 0.0
        %475 = vmatprep.subr.mxu0 0.0
        %476 = vmatpush1.msra.mxu0 0.0
        %477 = vmatprep.subr.mxu0 0.0
        %478 = vmatpush1.msra.mxu0 0.0
        %479 = vmatprep.subr.mxu0 0.0
        %480 = vmatpush1.msra.mxu0 0.0
        %481 = vmatprep.subr.mxu0 0.0
        %482 = vmatpush1.msra.mxu0 0.0
        %483 = vmatprep.subr.mxu0 0.0
        %484 = vmatpush1.msra.mxu0 0.0
        %485 = vmatprep.subr.mxu0 0.0
        %486 = vmatpush1.msra.mxu0 0.0
        %487 = vmatprep.subr.mxu0 0.0
        %488 = vmatpush1.msra.mxu0 0.0
        %489 = vmatprep.subr.mxu0 0.0
        %490 = vmatpush1.msra.mxu0 0.0
        %491 = vmatprep.subr.mxu0 0.0
        %492 = vmatpush1.msra.mxu0 0.0
        %493 = vmatprep.subr.mxu0 0.0
        %494 = vmatpush1.msra.mxu0 0.0
        %495 = vmatprep.subr.mxu0 0.0
        %496 = vmatpush1.msra.mxu0 0.0
        %497 = vmatprep.subr.mxu0 0.0
        %498 = vmatpush1.msra.mxu0 0.0
        %499 = vmatprep.mubr.f32.mxu0 0.0
        %500 = vmatmul.mubr.f32.gmra.mrb[0].mxu0 %v433
        %v501 = vpop.f32.mrb[0].mxu0
        %v502 = vadd.f32 0.0, %v501
        %v503 = vpop.f32.mrb[0].mxu0
        %v504 = vadd.f32 0.0, %v503
        %505 = vdwg.mxu0
        %vm506 = vcmask 138240
        %507 = vst.msk [vmem:[#allocation2] sm:$0xff] %vm506, 0.0
        %vm508 = vcmask 277640
        %509 = vst.msk [vmem:[#allocation2 + $0x10] sm:$0xff] %vm508, 0.0
        %v510 = vld [vmem:[%s382] sm:$0xff]
        %v512 = vcombine.high %v510, %v510
        %513 = vrot.lane.b32.xlu0 %v510, 17
        %v514 = vpop.permute.xlu0 %513
        %515 = vrot.lane.b32.xlu0 %v512, 17
        %v516 = vpop.permute.xlu0 %515
        %v517 = vsel %vm506, %v514, %v516
        %vm521 = vcmask 1043592
        %522 = vst.msk [vmem:[#allocation2] sm:$0xf] %vm521, %v514
        %523 = vst [vmem:[#allocation2 + $0x8] sm:$0xf] %v517
        %vm524 = vcmask 134144
        %525 = vst.msk [vmem:[#allocation2 + $0x10] sm:$0xf] %vm524, %v516
        %v528 = vrot.slane %v502, 4
        %v529 = vrot.slane %v504, 4
        %530 = vrot.lane.b32.xlu0 %v528, 17
        %v531 = vpop.permute.xlu0 %530
        %532 = vrot.lane.b32.xlu0 %v529, 17
        %v533 = vpop.permute.xlu0 %532
        %v534 = vsel %vm506, %v531, %v533
        %vm538 = vcmask 1047692
        %539 = vst.msk [vmem:[#allocation2] sm:$0xf0] %vm538, %v531
        %540 = vst [vmem:[#allocation2 + $0x8] sm:$0xf0] %v534
        %vm541 = vcmask 138244
        %542 = vst.msk [vmem:[#allocation2 + $0x10] sm:$0xf0] %vm541, %v533
        %v543 = vld [vmem:[#allocation2] sm:$0xff]
        %v544 = vld [vmem:[#allocation2 + $0x8] sm:$0xff]
        %v545 = vsel %vm410, 1, 0
        %v546 = vsel %vm411, 1, 0
        %vm547 = vcmp.eq.s32.totalorder %v545, 1
        %vm548 = vcmp.eq.s32.totalorder %v546, 1
        %v549 = vsel %vm547, %v543, 0.0
        %v550 = vsel %vm548, %v544, 0.0
        %551 = vst [vmem:[#allocation4] sm:$0xff] %v549
        %552 = vst [vmem:[#allocation4 + $0x8] sm:$0xff] %v550
        %v553 = vld [vmem:[#allocation2] sm:$0xff]
        %v554 = vld [vmem:[#allocation2 + $0x8] sm:$0xff]
        %v555 = vld [vmem:[#allocation2 + $0x10] sm:$0xff]
        %559 = vrot.lane.b32.xlu0 %v553, 127
        %v560 = vpop.permute.xlu0 %559
        %561 = vrot.lane.b32.xlu0 %v554, 127
        %v562 = vpop.permute.xlu0 %561
        %563 = vrot.lane.b32.xlu0 %v555, 127
        %v564 = vpop.permute.xlu0 %563
        %vm565 = vcmask 1039360
        %v566 = vsel %vm565, %v560, %v562
        %v567 = vsel %vm565, %v562, %v564
        %570 = vst [vmem:[#allocation4 + $0x10] sm:$0xff] %v566
        %571 = vst [vmem:[#allocation4 + $0x18] sm:$0xff] %v567
        %v572 = vld [vmem:[#allocation2] sm:$0xff]
        %v573 = vld [vmem:[#allocation2 + $0x8] sm:$0xff]
        %v574 = vld [vmem:[#allocation2 + $0x10] sm:$0xff]
        %v575 = vsel %vm412, 1, 0
        %v576 = vsel %vm413, 1, 0
        %vm577 = vcmp.eq.s32.totalorder %v575, 1
        %vm578 = vcmp.eq.s32.totalorder %v576, 1
        %582 = vrot.lane.b32.xlu0 %v572, 126
        %v583 = vpop.permute.xlu0 %582
        %584 = vrot.lane.b32.xlu0 %v573, 126
        %v585 = vpop.permute.xlu0 %584
        %586 = vrot.lane.b32.xlu0 %v574, 126
        %v587 = vpop.permute.xlu0 %586
        %vm588 = vcmask 1031168
        %v589 = vsel %vm588, %v583, %v585
        %v590 = vsel %vm588, %v585, %v587
        %v593 = vsel %vm577, %v589, 0.0
        %v594 = vsel %vm578, %v590, 0.0
        %595 = vst [vmem:[#allocation4 + $0x20] sm:$0xff] %v593
        %596 = vst [vmem:[#allocation4 + $0x28] sm:$0xff] %v594
        %v597 = vld [vmem:[#allocation2] sm:$0xff]
        %v598 = vld [vmem:[#allocation2 + $0x8] sm:$0xff]
        %v599 = vld [vmem:[#allocation2 + $0x10] sm:$0xff]
        %603 = vrot.lane.b32.xlu0 %v597, 112
        %v604 = vpop.permute.xlu0 %603
        %605 = vrot.lane.b32.xlu0 %v598, 112
        %v606 = vpop.permute.xlu0 %605
        %607 = vrot.lane.b32.xlu0 %v599, 112
        %v608 = vpop.permute.xlu0 %607
        %vm609 = vcmask 916480
        %v610 = vsel %vm609, %v604, %v606
        %v611 = vsel %vm609, %v606, %v608
        %v614 = vsel %vm547, %v610, 0.0
        %v615 = vsel %vm548, %v611, 0.0
        %616 = vst [vmem:[#allocation4 + $0x30] sm:$0xff] %v614
        %617 = vst [vmem:[#allocation4 + $0x38] sm:$0xff] %v615
        %v618 = vld [vmem:[#allocation2] sm:$0xff]
        %v619 = vld [vmem:[#allocation2 + $0x8] sm:$0xff]
        %v620 = vld [vmem:[#allocation2 + $0x10] sm:$0xff]
        %624 = vrot.lane.b32.xlu0 %v618, 111
        %v625 = vpop.permute.xlu0 %624
        %626 = vrot.lane.b32.xlu0 %v619, 111
        %v627 = vpop.permute.xlu0 %626
        %628 = vrot.lane.b32.xlu0 %v620, 111
        %v629 = vpop.permute.xlu0 %628
        %vm630 = vcmask 908288
        %v631 = vsel %vm630, %v625, %v627
        %v632 = vsel %vm630, %v627, %v629
        %635 = vst [vmem:[#allocation4 + $0x40] sm:$0xff] %v631
        %636 = vst [vmem:[#allocation4 + $0x48] sm:$0xff] %v632
        %v637 = vld [vmem:[#allocation2] sm:$0xff]
        %v638 = vld [vmem:[#allocation2 + $0x8] sm:$0xff]
        %v639 = vld [vmem:[#allocation2 + $0x10] sm:$0xff]
        %643 = vrot.lane.b32.xlu0 %v637, 110
        %v644 = vpop.permute.xlu0 %643
        %645 = vrot.lane.b32.xlu0 %v638, 110
        %v646 = vpop.permute.xlu0 %645
        %647 = vrot.lane.b32.xlu0 %v639, 110
        %v648 = vpop.permute.xlu0 %647
        %vm649 = vcmask 900096
        %v650 = vsel %vm649, %v644, %v646
        %v651 = vsel %vm649, %v646, %v648
        %v654 = vsel %vm577, %v650, 0.0
        %v655 = vsel %vm578, %v651, 0.0
        %656 = vst [vmem:[#allocation4 + $0x50] sm:$0xff] %v654
        %657 = vst [vmem:[#allocation4 + $0x58] sm:$0xff] %v655
        %v658 = vld [vmem:[#allocation2] sm:$0xff]
        %v659 = vld [vmem:[#allocation2 + $0x8] sm:$0xff]
        %v660 = vld [vmem:[#allocation2 + $0x10] sm:$0xff]
        %664 = vrot.lane.b32.xlu0 %v658, 96
        %v665 = vpop.permute.xlu0 %664
        %666 = vrot.lane.b32.xlu0 %v659, 96
        %v667 = vpop.permute.xlu0 %666
        %668 = vrot.lane.b32.xlu0 %v660, 96
        %v669 = vpop.permute.xlu0 %668
        %vm670 = vcmask 785408
        %v671 = vsel %vm670, %v665, %v667
        %v672 = vsel %vm670, %v667, %v669
        %v675 = vsel %vm547, %v671, 0.0
        %v676 = vsel %vm548, %v672, 0.0
        %677 = vst [vmem:[#allocation4 + $0x60] sm:$0xff] %v675
        %678 = vst [vmem:[#allocation4 + $0x68] sm:$0xff] %v676
        %v679 = vld [vmem:[#allocation2] sm:$0xff]
        %v680 = vld [vmem:[#allocation2 + $0x8] sm:$0xff]
        %v681 = vld [vmem:[#allocation2 + $0x10] sm:$0xff]
        %685 = vrot.lane.b32.xlu0 %v679, 95
        %v686 = vpop.permute.xlu0 %685
        %687 = vrot.lane.b32.xlu0 %v680, 95
        %v688 = vpop.permute.xlu0 %687
        %689 = vrot.lane.b32.xlu0 %v681, 95
        %v690 = vpop.permute.xlu0 %689
        %vm691 = vcmask 777216
        %v692 = vsel %vm691, %v686, %v688
        %v693 = vsel %vm691, %v688, %v690
        %696 = vst [vmem:[#allocation4 + $0x70] sm:$0xff] %v692
        %697 = vst [vmem:[#allocation4 + $0x78] sm:$0xff] %v693
        %v698 = vld [vmem:[#allocation2] sm:$0xff]
        %v699 = vld [vmem:[#allocation2 + $0x8] sm:$0xff]
        %v700 = vld [vmem:[#allocation2 + $0x10] sm:$0xff]
        %704 = vrot.lane.b32.xlu0 %v698, 94
        %v705 = vpop.permute.xlu0 %704
        %706 = vrot.lane.b32.xlu0 %v699, 94
        %v707 = vpop.permute.xlu0 %706
        %708 = vrot.lane.b32.xlu0 %v700, 94
        %v709 = vpop.permute.xlu0 %708
        %vm710 = vcmask 769024
        %v711 = vsel %vm710, %v705, %v707
        %v712 = vsel %vm710, %v707, %v709
        %v715 = vsel %vm577, %v711, 0.0
        %v716 = vsel %vm578, %v712, 0.0
        %717 = vst [vmem:[#allocation4 + $0x80] sm:$0xff] %v715
        %718 = vst [vmem:[#allocation4 + $0x88] sm:$0xff] %v716
        %v719 = vld [vmem:[%s3] sm:$0xf]
        %v720 = vld [vmem:[#allocation4] sm:$0xff]
        %v721 = vld [vmem:[#allocation4 + $0x8] sm:$0xff]
        %v722 = vld [vmem:[#allocation4 + $0x10] sm:$0xff]
        %v723 = vld [vmem:[#allocation4 + $0x18] sm:$0xff]
        %v724 = vld [vmem:[#allocation4 + $0x20] sm:$0xff]
        %v725 = vld [vmem:[#allocation4 + $0x28] sm:$0xff]
        %v726 = vld [vmem:[#allocation4 + $0x30] sm:$0xff]
        %v727 = vld [vmem:[#allocation4 + $0x38] sm:$0xff]
        %v728 = vld [vmem:[#allocation4 + $0x40] sm:$0xff]
        %v729 = vld [vmem:[#allocation4 + $0x48] sm:$0xff]
        %v730 = vld [vmem:[#allocation4 + $0x50] sm:$0xff]
        %v731 = vld [vmem:[#allocation4 + $0x58] sm:$0xff]
        %v732 = vld [vmem:[#allocation4 + $0x60] sm:$0xff]
        %v733 = vld [vmem:[#allocation4 + $0x68] sm:$0xff]
        %v734 = vld [vmem:[#allocation4 + $0x70] sm:$0xff]
        %v735 = vld [vmem:[#allocation4 + $0x78] sm:$0xff]
        %v736 = vld [vmem:[#allocation4 + $0x80] sm:$0xff]
        %v737 = vld [vmem:[#allocation4 + $0x88] sm:$0xff]
        %vm738 = vcmask 588800
        %v740 = vsel %vm738, %v719, 0
        %742 = vmatprep.subr.mxu0 %v721
        %743 = vmatpush1.msra.mxu0 %v720
        %744 = vmatprep.subr.mxu0 %v723
        %745 = vmatpush1.msra.mxu0 %v722
        %746 = vmatprep.subr.mxu0 %v725
        %747 = vmatpush1.msra.mxu0 %v724
        %748 = vmatprep.subr.mxu0 %v727
        %749 = vmatpush1.msra.mxu0 %v726
        %750 = vmatprep.subr.mxu0 %v729
        %751 = vmatpush1.msra.mxu0 %v728
        %752 = vmatprep.subr.mxu0 %v731
        %753 = vmatpush1.msra.mxu0 %v730
        %754 = vmatprep.subr.mxu0 %v733
        %755 = vmatpush1.msra.mxu0 %v732
        %756 = vmatprep.subr.mxu0 %v735
        %757 = vmatpush1.msra.mxu0 %v734
        %758 = vmatprep.subr.mxu0 %v737
        %759 = vmatpush1.msra.mxu0 %v736
        %760 = vmatprep.subr.mxu0 0.0
        %761 = vmatpush1.msra.mxu0 0.0
        %762 = vmatprep.subr.mxu0 0.0
        %763 = vmatpush1.msra.mxu0 0.0
        %764 = vmatprep.subr.mxu0 0.0
        %765 = vmatpush1.msra.mxu0 0.0
        %766 = vmatprep.subr.mxu0 0.0
        %767 = vmatpush1.msra.mxu0 0.0
        %768 = vmatprep.subr.mxu0 0.0
        %769 = vmatpush1.msra.mxu0 0.0
        %770 = vmatprep.subr.mxu0 0.0
        %771 = vmatpush1.msra.mxu0 0.0
        %772 = vmatprep.subr.mxu0 0.0
        %773 = vmatpush1.msra.mxu0 0.0
        %774 = vmatprep.subr.mxu0 0.0
        %775 = vmatpush1.msra.mxu0 0.0
        %776 = vmatprep.subr.mxu0 0.0
        %777 = vmatpush1.msra.mxu0 0.0
        %778 = vmatprep.subr.mxu0 0.0
        %779 = vmatpush1.msra.mxu0 0.0
        %780 = vmatprep.subr.mxu0 0.0
        %781 = vmatpush1.msra.mxu0 0.0
        %782 = vmatprep.subr.mxu0 0.0
        %783 = vmatpush1.msra.mxu0 0.0
        %784 = vmatprep.subr.mxu0 0.0
        %785 = vmatpush1.msra.mxu0 0.0
        %786 = vmatprep.subr.mxu0 0.0
        %787 = vmatpush1.msra.mxu0 0.0
        %788 = vmatprep.subr.mxu0 0.0
        %789 = vmatpush1.msra.mxu0 0.0
        %790 = vmatprep.subr.mxu0 0.0
        %791 = vmatpush1.msra.mxu0 0.0
        %792 = vmatprep.subr.mxu0 0.0
        %793 = vmatpush1.msra.mxu0 0.0
        %794 = vmatprep.subr.mxu0 0.0
        %795 = vmatpush1.msra.mxu0 0.0
        %796 = vmatprep.subr.mxu0 0.0
        %797 = vmatpush1.msra.mxu0 0.0
        %798 = vmatprep.subr.mxu0 0.0
        %799 = vmatpush1.msra.mxu0 0.0
        %800 = vmatprep.subr.mxu0 0.0
        %801 = vmatpush1.msra.mxu0 0.0
        %802 = vmatprep.subr.mxu0 0.0
        %803 = vmatpush1.msra.mxu0 0.0
        %804 = vmatprep.subr.mxu0 0.0
        %805 = vmatpush1.msra.mxu0 0.0
        %806 = vmatprep.mubr.f32.mxu0 0.0
        %807 = vmatmul.mubr.f32.gmra.mrb[0].mxu0 %v740
        %v808 = vpop.f32.mrb[0].mxu0
        %v809 = vadd.f32 0.0, %v808
        %v810 = vpop.f32.mrb[0].mxu0
        %v811 = vadd.f32 0.0, %v810
        %812 = vdwg.mxu0
        %v813 = vld [vmem:[%s4] sm:$0xf]
        %815 = vset.pattern.permute.xlu0 0
        %816 = vperm.xlu0 %815, %v813
        %v817 = vpop.permute.xlu0 %816
        %v819 = vmul.f32 %v809, %v817
        %v820 = vmul.f32 %v811, %v817
        %v821 = vld [vmem:[%s5] sm:$0xf]
        %823 = vset.pattern.permute.xlu0 0
        %824 = vperm.xlu0 %823, %v821
        %v825 = vpop.permute.xlu0 %824
        %v827 = vadd.f32 %v819, %v825
        %v828 = vadd.f32 %v820, %v825
        %vm829 = vcmp.gt.f32.partialorder %v827, 0.0
        %vm830 = vcmp.gt.f32.partialorder %v828, 0.0
        %v831 = vmul.f32 %v827, 0.1
        %v832 = vmul.f32 %v828, 0.1
        %v833 = vsel %vm829, %v827, %v831
        %v834 = vsel %vm830, %v828, %v832
        %835 = vst.msk [vmem:[#allocation3] sm:$0xf] %vm524, 0.0
        %vm836 = vcmask 273544
        %837 = vst.msk [vmem:[#allocation3 + $0x8] sm:$0xf] %vm836, 0.0
        %v840 = vcombine.low %v833, %v834
        %841 = vrot.lane.b32.xlu0 %v840, 17
        %v842 = vpop.permute.xlu0 %841
        %v843 = vrot.slane %v842, 4
        %v844 = vsel %vm506, %v843, %v842
        %vm847 = vcmask 1047556
        %vm848 = vmor %vm847, %vm521
        %849 = vst.msk [vmem:[#allocation3] sm:$0xff] %vm848, %v844
        %850 = vst.msk [vmem:[#allocation3 + $0x8] sm:$0xf] %vm524, %v843
        %v851 = vld [vmem:[#allocation3] sm:$0xff]
        %v853 = vcombine.high %v851, %v851
        %v855 = vsel %vm547, %v851, 0.0
        %v856 = vsel %vm548, %v853, 0.0
        %857 = vst [vmem:[#allocation5] sm:$0xf] %v855
        %858 = vst [vmem:[#allocation5 + $0x8] sm:$0xf] %v856
        %v859 = vld [vmem:[#allocation3] sm:$0xff]
        %v860 = vld [vmem:[#allocation3 + $0x8] sm:$0xf]
        %v863 = vcombine.low %v859, %v859
        %v864 = vcombine.low %v860, %v860
        %865 = vrot.lane.b32.xlu0 %v863, 127
        %v866 = vpop.permute.xlu0 %865
        %867 = vrot.lane.b32.xlu0 %v859, 127
        %v868 = vpop.permute.xlu0 %867
        %869 = vrot.lane.b32.xlu0 %v864, 127
        %v870 = vpop.permute.xlu0 %869
        %v871 = vsel %vm565, %v866, %v868
        %v872 = vsel %vm565, %v868, %v870
        %875 = vst [vmem:[#allocation5] sm:$0xf0] %v871
        %876 = vst [vmem:[#allocation5 + $0x8] sm:$0xf0] %v872
        %v877 = vld [vmem:[#allocation3] sm:$0xff]
        %v878 = vld [vmem:[#allocation3 + $0x8] sm:$0xf]
        %v881 = vcombine.high %v877, %v877
        %882 = vrot.lane.b32.xlu0 %v877, 126
        %v883 = vpop.permute.xlu0 %882
        %884 = vrot.lane.b32.xlu0 %v881, 126
        %v885 = vpop.permute.xlu0 %884
        %886 = vrot.lane.b32.xlu0 %v878, 126
        %v887 = vpop.permute.xlu0 %886
        %v888 = vsel %vm588, %v883, %v885
        %v889 = vsel %vm588, %v885, %v887
        %v892 = vsel %vm577, %v888, 0.0
        %v893 = vsel %vm578, %v889, 0.0
        %894 = vst [vmem:[#allocation5 + $0x10] sm:$0xf] %v892
        %895 = vst [vmem:[#allocation5 + $0x18] sm:$0xf] %v893
        %v896 = vld [vmem:[#allocation3] sm:$0xff]
        %v897 = vld [vmem:[#allocation3 + $0x8] sm:$0xf]
        %v900 = vcombine.high %v896, %v896
        %901 = vrot.lane.b32.xlu0 %v896, 112
        %v902 = vpop.permute.xlu0 %901
        %903 = vrot.lane.b32.xlu0 %v900, 112
        %v904 = vpop.permute.xlu0 %903
        %905 = vrot.lane.b32.xlu0 %v897, 112
        %v906 = vpop.permute.xlu0 %905
        %v907 = vsel %vm609, %v902, %v904
        %v908 = vsel %vm609, %v904, %v906
        %v911 = vsel %vm547, %v907, 0.0
        %v912 = vsel %vm548, %v908, 0.0
        %v915 = vrot.slane %v911, 4
        %v916 = vrot.slane %v912, 4
        %919 = vst [vmem:[#allocation5 + $0x10] sm:$0xf0] %v915
        %920 = vst [vmem:[#allocation5 + $0x18] sm:$0xf0] %v916
        %v921 = vld [vmem:[#allocation3] sm:$0xff]
        %v922 = vld [vmem:[#allocation3 + $0x8] sm:$0xf]
        %v925 = vcombine.high %v921, %v921
        %926 = vrot.lane.b32.xlu0 %v921, 111
        %v927 = vpop.permute.xlu0 %926
        %928 = vrot.lane.b32.xlu0 %v925, 111
        %v929 = vpop.permute.xlu0 %928
        %930 = vrot.lane.b32.xlu0 %v922, 111
        %v931 = vpop.permute.xlu0 %930
        %v932 = vsel %vm630, %v927, %v929
        %v933 = vsel %vm630, %v929, %v931
        %936 = vst [vmem:[#allocation5 + $0x20] sm:$0xf] %v932
        %937 = vst [vmem:[#allocation5 + $0x28] sm:$0xf] %v933
        %v938 = vld [vmem:[#allocation3] sm:$0xff]
        %v939 = vld [vmem:[#allocation3 + $0x8] sm:$0xf]
        %v942 = vcombine.high %v938, %v938
        %943 = vrot.lane.b32.xlu0 %v938, 110
        %v944 = vpop.permute.xlu0 %943
        %945 = vrot.lane.b32.xlu0 %v942, 110
        %v946 = vpop.permute.xlu0 %945
        %947 = vrot.lane.b32.xlu0 %v939, 110
        %v948 = vpop.permute.xlu0 %947
        %v949 = vsel %vm649, %v944, %v946
        %v950 = vsel %vm649, %v946, %v948
        %v953 = vsel %vm577, %v949, 0.0
        %v954 = vsel %vm578, %v950, 0.0
        %v957 = vrot.slane %v953, 4
        %v958 = vrot.slane %v954, 4
        %961 = vst [vmem:[#allocation5 + $0x20] sm:$0xf0] %v957
        %962 = vst [vmem:[#allocation5 + $0x28] sm:$0xf0] %v958
        %v963 = vld [vmem:[#allocation3] sm:$0xff]
        %v964 = vld [vmem:[#allocation3 + $0x8] sm:$0xf]
        %v967 = vcombine.high %v963, %v963
        %968 = vrot.lane.b32.xlu0 %v963, 96
        %v969 = vpop.permute.xlu0 %968
        %970 = vrot.lane.b32.xlu0 %v967, 96
        %v971 = vpop.permute.xlu0 %970
        %972 = vrot.lane.b32.xlu0 %v964, 96
        %v973 = vpop.permute.xlu0 %972
        %v974 = vsel %vm670, %v969, %v971
        %v975 = vsel %vm670, %v971, %v973
        %v978 = vsel %vm547, %v974, 0.0
        %v979 = vsel %vm548, %v975, 0.0
        %980 = vst [vmem:[#allocation5 + $0x30] sm:$0xf] %v978
        %981 = vst [vmem:[#allocation5 + $0x38] sm:$0xf] %v979
        %v982 = vld [vmem:[#allocation3] sm:$0xff]
        %v983 = vld [vmem:[#allocation3 + $0x8] sm:$0xf]
        %v986 = vcombine.low %v982, %v982
        %v987 = vcombine.low %v983, %v983
        %988 = vrot.lane.b32.xlu0 %v986, 95
        %v989 = vpop.permute.xlu0 %988
        %990 = vrot.lane.b32.xlu0 %v982, 95
        %v991 = vpop.permute.xlu0 %990
        %992 = vrot.lane.b32.xlu0 %v987, 95
        %v993 = vpop.permute.xlu0 %992
        %v994 = vsel %vm691, %v989, %v991
        %v995 = vsel %vm691, %v991, %v993
        %998 = vst [vmem:[#allocation5 + $0x30] sm:$0xf0] %v994
        %999 = vst [vmem:[#allocation5 + $0x38] sm:$0xf0] %v995
        %v1000 = vld [vmem:[#allocation3] sm:$0xff]
        %v1001 = vld [vmem:[#allocation3 + $0x8] sm:$0xf]
        %v1004 = vcombine.high %v1000, %v1000
        %1005 = vrot.lane.b32.xlu0 %v1000, 94
        %v1006 = vpop.permute.xlu0 %1005
        %1007 = vrot.lane.b32.xlu0 %v1004, 94
        %v1008 = vpop.permute.xlu0 %1007
        %1009 = vrot.lane.b32.xlu0 %v1001, 94
        %v1010 = vpop.permute.xlu0 %1009
        %v1011 = vsel %vm710, %v1006, %v1008
        %v1012 = vsel %vm710, %v1008, %v1010
        %v1015 = vsel %vm577, %v1011, 0.0
        %v1016 = vsel %vm578, %v1012, 0.0
        %1017 = vst [vmem:[#allocation5 + $0x40] sm:$0xf] %v1015
        %1018 = vst [vmem:[#allocation5 + $0x48] sm:$0xf] %v1016
        %v1019 = vld [vmem:[%s6] sm:$0xf]
        %v1020 = vld [vmem:[#allocation5] sm:$0xff]
        %v1021 = vld [vmem:[#allocation5 + $0x8] sm:$0xff]
        %v1022 = vld [vmem:[#allocation5 + $0x10] sm:$0xff]
        %v1023 = vld [vmem:[#allocation5 + $0x18] sm:$0xff]
        %v1024 = vld [vmem:[#allocation5 + $0x20] sm:$0xff]
        %v1025 = vld [vmem:[#allocation5 + $0x28] sm:$0xff]
        %v1026 = vld [vmem:[#allocation5 + $0x30] sm:$0xff]
        %v1027 = vld [vmem:[#allocation5 + $0x38] sm:$0xff]
        %v1028 = vld [vmem:[#allocation5 + $0x40] sm:$0xf]
        %v1029 = vld [vmem:[#allocation5 + $0x48] sm:$0xf]
        %vm1030 = vcmask 293888
        %v1032 = vsel %vm1030, %v1019, 0
        %vm1034 = vcmask 1043456
        %v1036 = vsel %vm1034, %v1028, 0
        %v1039 = vsel %vm1034, %v1029, 0
        %1041 = vmatprep.subr.mxu0 %v1021
        %1042 = vmatpush1.msra.mxu0 %v1020
        %1043 = vmatprep.subr.mxu0 %v1023
        %1044 = vmatpush1.msra.mxu0 %v1022
        %1045 = vmatprep.subr.mxu0 %v1025
        %1046 = vmatpush1.msra.mxu0 %v1024
        %1047 = vmatprep.subr.mxu0 %v1027
        %1048 = vmatpush1.msra.mxu0 %v1026
        %1049 = vmatprep.subr.mxu0 %v1039
        %1050 = vmatpush1.msra.mxu0 %v1036
        %1051 = vmatprep.subr.mxu0 0.0
        %1052 = vmatpush1.msra.mxu0 0.0
        %1053 = vmatprep.subr.mxu0 0.0
        %1054 = vmatpush1.msra.mxu0 0.0
        %1055 = vmatprep.subr.mxu0 0.0
        %1056 = vmatpush1.msra.mxu0 0.0
        %1057 = vmatprep.subr.mxu0 0.0
        %1058 = vmatpush1.msra.mxu0 0.0
        %1059 = vmatprep.subr.mxu0 0.0
        %1060 = vmatpush1.msra.mxu0 0.0
        %1061 = vmatprep.subr.mxu0 0.0
        %1062 = vmatpush1.msra.mxu0 0.0
        %1063 = vmatprep.subr.mxu0 0.0
        %1064 = vmatpush1.msra.mxu0 0.0
        %1065 = vmatprep.subr.mxu0 0.0
        %1066 = vmatpush1.msra.mxu0 0.0
        %1067 = vmatprep.subr.mxu0 0.0
        %1068 = vmatpush1.msra.mxu0 0.0
        %1069 = vmatprep.subr.mxu0 0.0
        %1070 = vmatpush1.msra.mxu0 0.0
        %1071 = vmatprep.subr.mxu0 0.0
        %1072 = vmatpush1.msra.mxu0 0.0
        %1073 = vmatprep.subr.mxu0 0.0
        %1074 = vmatpush1.msra.mxu0 0.0
        %1075 = vmatprep.subr.mxu0 0.0
        %1076 = vmatpush1.msra.mxu0 0.0
        %1077 = vmatprep.subr.mxu0 0.0
        %1078 = vmatpush1.msra.mxu0 0.0
        %1079 = vmatprep.subr.mxu0 0.0
        %1080 = vmatpush1.msra.mxu0 0.0
        %1081 = vmatprep.subr.mxu0 0.0
        %1082 = vmatpush1.msra.mxu0 0.0
        %1083 = vmatprep.subr.mxu0 0.0
        %1084 = vmatpush1.msra.mxu0 0.0
        %1085 = vmatprep.subr.mxu0 0.0
        %1086 = vmatpush1.msra.mxu0 0.0
        %1087 = vmatprep.subr.mxu0 0.0
        %1088 = vmatpush1.msra.mxu0 0.0
        %1089 = vmatprep.subr.mxu0 0.0
        %1090 = vmatpush1.msra.mxu0 0.0
        %1091 = vmatprep.subr.mxu0 0.0
        %1092 = vmatpush1.msra.mxu0 0.0
        %1093 = vmatprep.subr.mxu0 0.0
        %1094 = vmatpush1.msra.mxu0 0.0
        %1095 = vmatprep.subr.mxu0 0.0
        %1096 = vmatpush1.msra.mxu0 0.0
        %1097 = vmatprep.subr.mxu0 0.0
        %1098 = vmatpush1.msra.mxu0 0.0
        %1099 = vmatprep.subr.mxu0 0.0
        %1100 = vmatpush1.msra.mxu0 0.0
        %1101 = vmatprep.subr.mxu0 0.0
        %1102 = vmatpush1.msra.mxu0 0.0
        %1103 = vmatprep.subr.mxu0 0.0
        %1104 = vmatpush1.msra.mxu0 0.0
        %1105 = vmatprep.mubr.f32.mxu0 0.0
        %1106 = vmatmul.mubr.f32.gmra.mrb[0].mxu0 %v1032
        %v1107 = vpop.f32.mrb[0].mxu0
        %v1108 = vadd.f32 0.0, %v1107
        %v1109 = vpop.f32.mrb[0].mxu0
        %v1110 = vadd.f32 0.0, %v1109
        %1111 = vdwg.mxu0
        %v1112 = vld [vmem:[%s7] sm:$0xf]
        %1114 = vset.pattern.permute.xlu0 0
        %1115 = vperm.xlu0 %1114, %v1112
        %v1116 = vpop.permute.xlu0 %1115
        %v1118 = vmul.f32 %v1108, %v1116
        %v1119 = vmul.f32 %v1110, %v1116
        %v1120 = vld [vmem:[%s8] sm:$0xf]
        %1122 = vset.pattern.permute.xlu0 0
        %1123 = vperm.xlu0 %1122, %v1120
        %v1124 = vpop.permute.xlu0 %1123
        %v1126 = vadd.f32 %v1118, %v1124
        %v1127 = vadd.f32 %v1119, %v1124
        %vm1128 = vcmp.gt.f32.partialorder %v1126, 0.0
        %vm1129 = vcmp.gt.f32.partialorder %v1127, 0.0
        %v1130 = vmul.f32 %v1126, 0.1
        %v1131 = vmul.f32 %v1127, 0.1
        %v1132 = vsel %vm1128, %v1126, %v1130
        %v1133 = vsel %vm1129, %v1127, %v1131
        %v1136 = vcombine.low %v1132, %v1133
        %1138 = vst [vmem:[%s377] sm:$0xff] %v1136
        %s1139 = sand.u32 %s234, 1
        %s1140 = scalar_lea.sflag [#allocation8], %s1139
        %s1141 = sand.u32 %s234, 1
        %s1142 = smul.addr %s1141, 8
        %s1143 = scalar_lea.vmem [#allocation11], %s1142
        // Predicated region
        $region65: #{tpu_custom_call.1} parent=55 // pred_check
          %p1144 = pneg %p244
        $region66: #{tpu_custom_call.1} parent=55 // pred_check_branch
          %1146 = sbr.rel (%p1144) target = $region68
        $region67: #{tpu_custom_call.1} parent=55 // pred_region
          %s1148 = ssub.s32 128, 128
          %1149 = vsyncadd %s1140, %s1148
          %s1150 = smul.addr %s27, 2
          %s1151 = smul.addr %s1150, 64
          %s1152 = scalar_lea.hbm %s9, %s1151
          %s1154 = sshll.u32 %s1143, 4
          %s1155 = int_to_ptr.vmem [resolvable:$true] %s1154
          %1157 = dma.vmem_to_hbm [thread:$0]  %s1155, 128, %s1152, %s1140
        $region68: #{tpu_custom_call.1} parent=55 // pred_fallthru
          _
      $region56: #{tpu_custom_call.1} parent=5 // pred_fallthru
        _
      %p1158 = scmp.le.s32.totalorder 2, %s22
      // Predicated region
      $region69: #{tpu_custom_call.1} parent=5 // pred_check
        %p1159 = pneg %p1158
      $region70: #{tpu_custom_call.1} parent=5 // pred_check_branch
        %1161 = sbr.rel (%p1159) target = $region72
      $region71: #{tpu_custom_call.1} parent=5 // pred_region
        %s1162 = ssub.s32 %s22, 2
        // Predicated region
        $region73: #{tpu_custom_call.1} parent=71 // pred_check
          %p1163 = pneg %p250
        $region74: #{tpu_custom_call.1} parent=71 // pred_check_branch
          %1165 = sbr.rel (%p1163) target = $region76
        $region75: #{tpu_custom_call.1} parent=71 // pred_region
          %s1166 = sand.u32 %s235, 1
          %s1167 = scalar_lea.sflag [#allocation8], %s1166
          %s1168 = sand.u32 %s235, 1
          %s1169 = smul.addr %s1168, 8
          %s1170 = scalar_lea.vmem [#allocation11], %s1169
          %1171 = dma.done %s1167, 128
        $region76: #{tpu_custom_call.1} parent=71 // pred_fallthru
          _
      $region72: #{tpu_custom_call.1} parent=5 // pred_fallthru
        _
    $region6: #{tpu_custom_call.1} parent=1 // loop_footer
      %s26 = sadd.s32 1, %s22
    $region7: #{tpu_custom_call.1} parent=1 // loop_footer_branch
      %21 = sbr.rel target = $region3
    $region8: #{tpu_custom_call.1} parent=1 // loop_exit
      _
    %1172 = vsyncpa [#allocation7], 1
    %s1173 = scalar_lea.sflag [#allocation7], 1
    %1174 = vsyncpa %s1173, 1
    %1175 = vsyncpa [#allocation10], 1
    %1176 = vsyncpa [#allocation8], 1
    %s1177 = scalar_lea.sflag [#allocation8], 1
    %1178 = vsyncpa %s1177, 1

</llo_original>
